<compile_context>
chip_gen: v6e
topology: v6e:2x2x1
jax: 0.10.0
libtpu: 0.0.40
codegen_flags: <defaults>
</compile_context>

<pallas_src>
import functools
import math

import jax
import jax.numpy as jnp
from jax.experimental import pallas as pl
from jax.experimental.pallas import tpu as pltpu

LEAK = 0.01
BN_EPS = 1e-5
LANE = 128                    # pad tiny action dim to a lane-dense store
DEFAULT_BLOCK_BATCH = 512     # tile for large batches (512 works well on v5e/v6e/v7x)


def _round_up(x, m):
    return (x + m - 1) // m * m


# ---------------------------------------------------------------------------
# Fused kernel: BN stats + affine fold (once, into scratch) -> fc1 -> fc2 -> fc3.
# x is VMEM-resident for the whole grid; only the output tile streams out.
# Matmul inputs are bf16 with f32 accumulation; BN / activations stay in f32.
# ---------------------------------------------------------------------------
def _actor_fused_kernel(x_ref, gamma_ref, beta_ref,
                        w1_ref, b1_ref, w2_ref, b2_ref, w3_ref, b3_ref,
                        out_ref, scale_ref, shift_ref, *, batch, bm):
    b_pad = x_ref.shape[0]

    @pl.when(pl.program_id(0) == 0)
    def _():
        x = x_ref[...]                                       # (b_pad, S) f32
        mean = jnp.sum(x, axis=0, keepdims=True) * (1.0 / batch)
        xc = x - mean
        if b_pad != batch:                                   # mask zero-padded rows
            row = jax.lax.broadcasted_iota(jnp.int32, x.shape, 0)
            xc = jnp.where(row < batch, xc, 0.0)
        var = jnp.sum(xc * xc, axis=0, keepdims=True) * (1.0 / batch)
        scale = gamma_ref[...] * jax.lax.rsqrt(var + BN_EPS)
        scale_ref[...] = scale
        shift_ref[...] = beta_ref[...] - mean * scale

    if bm == b_pad:                                          # single-step fast path
        xt = x_ref[...]
    else:
        start = pl.multiple_of(pl.program_id(0) * bm, 8)
        xt = x_ref[pl.ds(start, bm), :]

    xn = xt * scale_ref[...] + shift_ref[...]

    h1 = jnp.dot(xn.astype(jnp.bfloat16), w1_ref[...],
                 preferred_element_type=jnp.float32) + b1_ref[...]
    h1 = jnp.maximum(h1, LEAK * h1)

    h2 = jnp.dot(h1.astype(jnp.bfloat16), w2_ref[...],
                 preferred_element_type=jnp.float32) + b2_ref[...]
    h2 = jnp.maximum(h2, LEAK * h2)

    h3 = jnp.dot(h2.astype(jnp.bfloat16), w3_ref[...],
                 preferred_element_type=jnp.float32) + b3_ref[...]
    out_ref[...] = jnp.tanh(h3)


# ---------------------------------------------------------------------------
# One-time parameter preparation (hoisted out of the per-call forward):
# bf16 casts of the matmul operands, lane-padding of fc3 weight/bias.
# ---------------------------------------------------------------------------
def prepare_actor_params(params):
    gamma, beta, w1, b1, w2, b2, w3, b3 = params
    fc2, action_size = w3.shape
    n_pad = _round_up(action_size, LANE)
    w3p = jnp.zeros((fc2, n_pad), jnp.bfloat16).at[:, :action_size].set(
        w3.astype(jnp.bfloat16))
    b3p = jnp.zeros((1, n_pad), jnp.float32).at[:, :action_size].set(
        b3.reshape(1, -1).astype(jnp.float32))
    prepped = (gamma.reshape(1, -1).astype(jnp.float32),
               beta.reshape(1, -1).astype(jnp.float32),
               w1.astype(jnp.bfloat16), b1.reshape(1, -1).astype(jnp.float32),
               w2.astype(jnp.bfloat16), b2.reshape(1, -1).astype(jnp.float32),
               w3p, b3p)
    return prepped, action_size


@functools.partial(jax.jit, static_argnames=("action_size", "block_batch"))
def actor_forward(state, prepped, *, action_size, block_batch=DEFAULT_BLOCK_BATCH):
    gamma, beta, w1, b1, w2, b2, w3p, b3p = prepped
    batch, state_size = state.shape
    fc1 = w1.shape[1]
    fc2 = w2.shape[1]
    n_pad = w3p.shape[1]

    # Batch tiling: a single grid step for small batches (no per-step overhead,
    # no megacore imbalance); block_batch-row tiles otherwise.
    bm = min(block_batch, _round_up(batch, 8))
    b_pad = _round_up(batch, bm)
    nb = b_pad // bm
    x_pad = state if b_pad == batch else jnp.pad(state, ((0, b_pad - batch), (0, 0)))

    const = lambda i: (0, 0)   # same block every step -> DMA'd once, VMEM-resident
    kernel = functools.partial(_actor_fused_kernel, batch=batch, bm=bm)

    # Rough VMEM footprint; only raise the scoped limit when actually needed.
    lane = lambda n: _round_up(n, LANE)
    est = (b_pad * lane(state_size) * 4                               # resident state
           + 2 * bm * n_pad * 4                                       # out double buffer
           + (lane(state_size) * fc1 + fc1 * fc2 + fc2 * n_pad) * 2   # bf16 weights
           + bm * (lane(state_size) + fc1 + fc2 + n_pad) * 4          # intermediates
           + (1 << 20))
    ckwargs = dict(dimension_semantics=("arbitrary",))   # scratch carried across steps
    if est > 12 * 1024 * 1024:
        # TODO(synk): batches too large for VMEM residency (~>64K rows) need a
        # streamed multi-pass variant; not implemented.
        ckwargs["vmem_limit_bytes"] = min(est, 100 * 1024 * 1024)

    out = pl.pallas_call(
        kernel,
        out_shape=jax.ShapeDtypeStruct((b_pad, n_pad), jnp.float32),
        grid_spec=pltpu.PrefetchScalarGridSpec(
            num_scalar_prefetch=0,
            grid=(nb,),
            in_specs=[
                pl.BlockSpec((b_pad, state_size), const),   # state, VMEM-resident
                pl.BlockSpec((1, state_size), const),       # gamma
                pl.BlockSpec((1, state_size), const),       # beta
                pl.BlockSpec((state_size, fc1), const),     # w1 (bf16)
                pl.BlockSpec((1, fc1), const),              # b1
                pl.BlockSpec((fc1, fc2), const),            # w2 (bf16)
                pl.BlockSpec((1, fc2), const),              # b2
                pl.BlockSpec((fc2, n_pad), const),          # w3 (bf16, lane-padded)
                pl.BlockSpec((1, n_pad), const),            # b3 (lane-padded)
            ],
            out_specs=pl.BlockSpec((bm, n_pad), lambda i: (i, 0)),
            scratch_shapes=[pltpu.VMEM((1, state_size), jnp.float32),   # scale
                            pltpu.VMEM((1, state_size), jnp.float32)],  # shift
        ),
        compiler_params=pltpu.CompilerParams(**ckwargs),
    )(x_pad, gamma, beta, w1, b1, w2, b2, w3p, b3p)

    # Lane-padded f32 store (dense vst); writeback amplification is negligible
    # at these batch sizes -- slice back to the real actions.
    return out[:batch, :action_size]


def init_actor_params(key, state_size, action_size, fc1=256, fc2=128, leak=LEAK):
    """Parameter init mirroring the PyTorch module (weights stored as [in, out]).

    fc1/fc2: Kaiming normal (fan_in, leaky_relu gain with a=leak);
    fc3: uniform(-3e-3, 3e-3); biases: PyTorch Linear default
    uniform(-1/sqrt(fan_in), 1/sqrt(fan_in)); BatchNorm gamma=1, beta=0.
    """
    keys = jax.random.split(key, 6)
    gain = math.sqrt(2.0 / (1.0 + leak * leak))

    def kaiming(k, fan_in, fan_out):
        std = gain / math.sqrt(fan_in)
        return jax.random.normal(k, (fan_in, fan_out), jnp.float32) * std

    def bias(k, fan_in, fan_out):
        bound = 1.0 / math.sqrt(fan_in)
        return jax.random.uniform(k, (1, fan_out), jnp.float32, -bound, bound)

    w1 = kaiming(keys[0], state_size, fc1)
    b1 = bias(keys[1], state_size, fc1)
    w2 = kaiming(keys[2], fc1, fc2)
    b2 = bias(keys[3], fc1, fc2)
    w3 = jax.random.uniform(keys[4], (fc2, action_size), jnp.float32, -0.003, 0.003)
    b3 = bias(keys[5], fc2, action_size)
    gamma = jnp.ones((1, state_size), jnp.float32)
    beta = jnp.zeros((1, state_size), jnp.float32)
    return (gamma, beta, w1, b1, w2, b2, w3, b3)


def actor_reference(state, params):
    """Pure-JAX f32 reference (training-mode BatchNorm) for correctness check."""
    gamma, beta, w1, b1, w2, b2, w3, b3 = params
    mean = jnp.mean(state, axis=0, keepdims=True)
    var = jnp.mean((state - mean) ** 2, axis=0, keepdims=True)
    xn = (state - mean) / jnp.sqrt(var + BN_EPS) * gamma + beta
    h1 = jax.nn.leaky_relu(xn @ w1 + b1, LEAK)
    h2 = jax.nn.leaky_relu(h1 @ w2 + b2, LEAK)
    return jnp.tanh(h2 @ w3 + b3)


# TODO(synk): eval-mode BatchNorm (running mean/var buffers) is not maintained;
# this matches the PyTorch module in train() mode only.

if __name__ == "__main__":
    key = jax.random.PRNGKey(0)
    k_param, k_state = jax.random.split(key)

    # Reacher-like sizes: state=33, action=4; batch=300 exercises padding
    # while running as a single fused grid step.
    batch, state_size, action_size = 300, 33, 4
    params = init_actor_params(k_param, state_size, action_size, fc1=256, fc2=128)
    prepped, act_n = prepare_actor_params(params)   # one-time weight prep
    state = jax.random.normal(k_state, (batch, state_size), jnp.float32)

    out = actor_forward(state, prepped, action_size=act_n)
    out = jax.block_until_ready(out)

    ref = actor_reference(state, params)
    assert out.shape == (batch, action_size)
    # bf16 matmul inputs with f32 accumulation vs pure-f32 reference.
    assert jnp.allclose(out, ref, atol=1e-2, rtol=1e-2), "mismatch vs reference"

    print("KERNEL_OK")
</pallas_src>

<mosaic_0001>
module attributes {stable_mosaic.version = 11 : i64} {
  func.func @_actor_fused_kernel(%arg0: i32, %arg1: memref<304x33xf32, #tpu.memory_space<vmem>>, %arg2: memref<1x33xf32, #tpu.memory_space<vmem>>, %arg3: memref<1x33xf32, #tpu.memory_space<vmem>>, %arg4: memref<33x256xbf16, #tpu.memory_space<vmem>>, %arg5: memref<1x256xf32, #tpu.memory_space<vmem>>, %arg6: memref<256x128xbf16, #tpu.memory_space<vmem>>, %arg7: memref<1x128xf32, #tpu.memory_space<vmem>>, %arg8: memref<128x128xbf16, #tpu.memory_space<vmem>>, %arg9: memref<1x128xf32, #tpu.memory_space<vmem>>, %arg10: memref<304x128xf32, #tpu.memory_space<vmem>>, %arg11: memref<1x33xf32, #tpu.memory_space<vmem>>, %arg12: memref<1x33xf32, #tpu.memory_space<vmem>>) attributes {dimension_semantics = [#tpu.dimension_semantics<arbitrary>], iteration_bounds = array<i64: 1>, scalar_prefetch = 0 : i64, scratch_operands = 2 : i64, tpu.core_type = #tpu.core_type<tc>, window_params = [{pipeline_mode = #tpu.pipeline_mode<synchronous>, transform_indices = @transform_0, window_bounds = array<i64: 304, 33>}, {pipeline_mode = #tpu.pipeline_mode<synchronous>, transform_indices = @transform_1, window_bounds = array<i64: 1, 33>}, {pipeline_mode = #tpu.pipeline_mode<synchronous>, transform_indices = @transform_2, window_bounds = array<i64: 1, 33>}, {pipeline_mode = #tpu.pipeline_mode<synchronous>, transform_indices = @transform_3, window_bounds = array<i64: 33, 256>}, {pipeline_mode = #tpu.pipeline_mode<synchronous>, transform_indices = @transform_4, window_bounds = array<i64: 1, 256>}, {pipeline_mode = #tpu.pipeline_mode<synchronous>, transform_indices = @transform_5, window_bounds = array<i64: 256, 128>}, {pipeline_mode = #tpu.pipeline_mode<synchronous>, transform_indices = @transform_6, window_bounds = array<i64: 1, 128>}, {pipeline_mode = #tpu.pipeline_mode<synchronous>, transform_indices = @transform_7, window_bounds = array<i64: 128, 128>}, {pipeline_mode = #tpu.pipeline_mode<synchronous>, transform_indices = @transform_8, window_bounds = array<i64: 1, 128>}, {transform_indices = @transform_9, window_bounds = array<i64: 304, 128>}]} {
    %c0_i32 = arith.constant 0 : i32
    %0 = arith.cmpi eq, %arg0, %c0_i32 : i32
    %1 = arith.extui %0 : i1 to i32
    %c0_i32_0 = arith.constant 0 : i32
    %2 = arith.cmpi ne, %1, %c0_i32_0 : i32
    scf.if %2 {
      %c0_24 = arith.constant 0 : index
      %c0_25 = arith.constant 0 : index
      %36 = vector.load %arg1[%c0_24, %c0_25] : memref<304x33xf32, #tpu.memory_space<vmem>>, vector<304x33xf32>
      %cst_26 = arith.constant dense<0.000000e+00> : vector<33xf32>
      %37 = vector.multi_reduction <add>, %36, %cst_26 [0] : vector<304x33xf32> to vector<33xf32>
      %38 = vector.shape_cast %37 : vector<33xf32> to vector<1x33xf32>
      %cst_27 = arith.constant 0.00333333341 : f32
      %39 = vector.broadcast %cst_27 : f32 to vector<1x33xf32>
      %40 = arith.mulf %38, %39 : vector<1x33xf32>
      %41 = vector.broadcast %40 : vector<1x33xf32> to vector<304x33xf32>
      %42 = arith.subf %36, %41 : vector<304x33xf32>
      %43 = tpu.iota {dimensions = array<i32: 0>} : vector<304x33xi32>
      %c300_i32 = arith.constant 300 : i32
      %44 = vector.broadcast %c300_i32 : i32 to vector<304x33xi32>
      %45 = arith.cmpi slt, %43, %44 : vector<304x33xi32>
      %cst_28 = arith.constant 0.000000e+00 : f32
      %46 = vector.broadcast %cst_28 : f32 to vector<304x33xf32>
      %47 = arith.select %45, %42, %46 : vector<304x33xi1>, vector<304x33xf32>
      %48 = arith.mulf %47, %47 : vector<304x33xf32>
      %cst_29 = arith.constant dense<0.000000e+00> : vector<33xf32>
      %49 = vector.multi_reduction <add>, %48, %cst_29 [0] : vector<304x33xf32> to vector<33xf32>
      %50 = vector.shape_cast %49 : vector<33xf32> to vector<1x33xf32>
      %cst_30 = arith.constant 0.00333333341 : f32
      %51 = vector.broadcast %cst_30 : f32 to vector<1x33xf32>
      %52 = arith.mulf %50, %51 : vector<1x33xf32>
      %c0_31 = arith.constant 0 : index
      %c0_32 = arith.constant 0 : index
      %53 = vector.load %arg2[%c0_31, %c0_32] : memref<1x33xf32, #tpu.memory_space<vmem>>, vector<1x33xf32>
      %cst_33 = arith.constant 9.99999974E-6 : f32
      %54 = vector.broadcast %cst_33 : f32 to vector<1x33xf32>
      %55 = arith.addf %52, %54 : vector<1x33xf32>
      %56 = math.rsqrt %55 : vector<1x33xf32>
      %57 = arith.mulf %53, %56 : vector<1x33xf32>
      %c0_34 = arith.constant 0 : index
      %c0_35 = arith.constant 0 : index
      %58 = vector.load %arg11[%c0_34, %c0_35] : memref<1x33xf32, #tpu.memory_space<vmem>>, vector<1x33xf32>
      tpu.vector_store %arg11[%c0_34, %c0_35], %57 {strides = array<i32>} : memref<1x33xf32, #tpu.memory_space<vmem>>, vector<1x33xf32>,
      %c0_36 = arith.constant 0 : index
      %c0_37 = arith.constant 0 : index
      %59 = vector.load %arg3[%c0_36, %c0_37] : memref<1x33xf32, #tpu.memory_space<vmem>>, vector<1x33xf32>
      %60 = arith.mulf %40, %57 : vector<1x33xf32>
      %61 = arith.subf %59, %60 : vector<1x33xf32>
      %c0_38 = arith.constant 0 : index
      %c0_39 = arith.constant 0 : index
      %62 = vector.load %arg12[%c0_38, %c0_39] : memref<1x33xf32, #tpu.memory_space<vmem>>, vector<1x33xf32>
      tpu.vector_store %arg12[%c0_38, %c0_39], %61 {strides = array<i32>} : memref<1x33xf32, #tpu.memory_space<vmem>>, vector<1x33xf32>,
    } else {
    }
    %c0 = arith.constant 0 : index
    %c0_1 = arith.constant 0 : index
    %3 = vector.load %arg1[%c0, %c0_1] : memref<304x33xf32, #tpu.memory_space<vmem>>, vector<304x33xf32>
    %c0_2 = arith.constant 0 : index
    %c0_3 = arith.constant 0 : index
    %4 = vector.load %arg11[%c0_2, %c0_3] : memref<1x33xf32, #tpu.memory_space<vmem>>, vector<1x33xf32>
    %5 = vector.broadcast %4 : vector<1x33xf32> to vector<304x33xf32>
    %6 = arith.mulf %3, %5 : vector<304x33xf32>
    %c0_4 = arith.constant 0 : index
    %c0_5 = arith.constant 0 : index
    %7 = vector.load %arg12[%c0_4, %c0_5] : memref<1x33xf32, #tpu.memory_space<vmem>>, vector<1x33xf32>
    %8 = vector.broadcast %7 : vector<1x33xf32> to vector<304x33xf32>
    %9 = arith.addf %6, %8 : vector<304x33xf32>
    %10 = arith.truncf %9 : vector<304x33xf32> to vector<304x33xbf16>
    %c0_6 = arith.constant 0 : index
    %c0_7 = arith.constant 0 : index
    %11 = vector.load %arg4[%c0_6, %c0_7] : memref<33x256xbf16, #tpu.memory_space<vmem>>, vector<33x256xbf16>
    %cst = arith.constant dense<0.000000e+00> : vector<304x256xf32>
    %12 = tpu.matmul %10, %11, %cst {dimension_numbers = #tpu.dot_dimension_numbers<[1], [0], [0], [1], [0, 0, 1, 1], [], []>} : vector<304x33xbf16>, vector<33x256xbf16>, vector<304x256xf32> -> vector<304x256xf32>
    %c0_8 = arith.constant 0 : index
    %c0_9 = arith.constant 0 : index
    %13 = vector.load %arg5[%c0_8, %c0_9] : memref<1x256xf32, #tpu.memory_space<vmem>>, vector<1x256xf32>
    %14 = vector.broadcast %13 : vector<1x256xf32> to vector<304x256xf32>
    %15 = arith.addf %12, %14 : vector<304x256xf32>
    %cst_10 = arith.constant 0.00999999977 : f32
    %16 = vector.broadcast %cst_10 : f32 to vector<304x256xf32>
    %17 = arith.mulf %16, %15 : vector<304x256xf32>
    %18 = arith.maximumf %15, %17 : vector<304x256xf32>
    %19 = arith.truncf %18 : vector<304x256xf32> to vector<304x256xbf16>
    %c0_11 = arith.constant 0 : index
    %c0_12 = arith.constant 0 : index
    %20 = vector.load %arg6[%c0_11, %c0_12] : memref<256x128xbf16, #tpu.memory_space<vmem>>, vector<256x128xbf16>
    %cst_13 = arith.constant dense<0.000000e+00> : vector<304x128xf32>
    %21 = tpu.matmul %19, %20, %cst_13 {dimension_numbers = #tpu.dot_dimension_numbers<[1], [0], [0], [1], [0, 0, 1, 1], [], []>} : vector<304x256xbf16>, vector<256x128xbf16>, vector<304x128xf32> -> vector<304x128xf32>
    %c0_14 = arith.constant 0 : index
    %c0_15 = arith.constant 0 : index
    %22 = vector.load %arg7[%c0_14, %c0_15] : memref<1x128xf32, #tpu.memory_space<vmem>>, vector<1x128xf32>
    %23 = vector.broadcast %22 : vector<1x128xf32> to vector<304x128xf32>
    %24 = arith.addf %21, %23 : vector<304x128xf32>
    %cst_16 = arith.constant 0.00999999977 : f32
    %25 = vector.broadcast %cst_16 : f32 to vector<304x128xf32>
    %26 = arith.mulf %25, %24 : vector<304x128xf32>
    %27 = arith.maximumf %24, %26 : vector<304x128xf32>
    %28 = arith.truncf %27 : vector<304x128xf32> to vector<304x128xbf16>
    %c0_17 = arith.constant 0 : index
    %c0_18 = arith.constant 0 : index
    %29 = vector.load %arg8[%c0_17, %c0_18] : memref<128x128xbf16, #tpu.memory_space<vmem>>, vector<128x128xbf16>
    %cst_19 = arith.constant dense<0.000000e+00> : vector<304x128xf32>
    %30 = tpu.matmul %28, %29, %cst_19 {dimension_numbers = #tpu.dot_dimension_numbers<[1], [0], [0], [1], [0, 0, 1, 1], [], []>} : vector<304x128xbf16>, vector<128x128xbf16>, vector<304x128xf32> -> vector<304x128xf32>
    %c0_20 = arith.constant 0 : index
    %c0_21 = arith.constant 0 : index
    %31 = vector.load %arg9[%c0_20, %c0_21] : memref<1x128xf32, #tpu.memory_space<vmem>>, vector<1x128xf32>
    %32 = vector.broadcast %31 : vector<1x128xf32> to vector<304x128xf32>
    %33 = arith.addf %30, %32 : vector<304x128xf32>
    %34 = math.tanh %33 : vector<304x128xf32>
    %c0_22 = arith.constant 0 : index
    %c0_23 = arith.constant 0 : index
    %35 = vector.load %arg10[%c0_22, %c0_23] : memref<304x128xf32, #tpu.memory_space<vmem>>, vector<304x128xf32>
    tpu.vector_store %arg10[%c0_22, %c0_23], %34 {strides = array<i32>} : memref<304x128xf32, #tpu.memory_space<vmem>>, vector<304x128xf32>,
    return
  }
  func.func @transform_0(%arg0: i32) -> (i32, i32) {
    %c0_i32 = arith.constant 0 : i32
    %c0_i32_0 = arith.constant 0 : i32
    %c0_i32_1 = arith.constant 0 : i32
    return %c0_i32, %c0_i32_0 : i32, i32
  }
  func.func @transform_1(%arg0: i32) -> (i32, i32) {
    %c0_i32 = arith.constant 0 : i32
    %c0_i32_0 = arith.constant 0 : i32
    %c0_i32_1 = arith.constant 0 : i32
    return %c0_i32, %c0_i32_0 : i32, i32
  }
  func.func @transform_2(%arg0: i32) -> (i32, i32) {
    %c0_i32 = arith.constant 0 : i32
    %c0_i32_0 = arith.constant 0 : i32
    %c0_i32_1 = arith.constant 0 : i32
    return %c0_i32, %c0_i32_0 : i32, i32
  }
  func.func @transform_3(%arg0: i32) -> (i32, i32) {
    %c0_i32 = arith.constant 0 : i32
    %c0_i32_0 = arith.constant 0 : i32
    %c0_i32_1 = arith.constant 0 : i32
    return %c0_i32, %c0_i32_0 : i32, i32
  }
  func.func @transform_4(%arg0: i32) -> (i32, i32) {
    %c0_i32 = arith.constant 0 : i32
    %c0_i32_0 = arith.constant 0 : i32
    %c0_i32_1 = arith.constant 0 : i32
    return %c0_i32, %c0_i32_0 : i32, i32
  }
  func.func @transform_5(%arg0: i32) -> (i32, i32) {
    %c0_i32 = arith.constant 0 : i32
    %c0_i32_0 = arith.constant 0 : i32
    %c0_i32_1 = arith.constant 0 : i32
    return %c0_i32, %c0_i32_0 : i32, i32
  }
  func.func @transform_6(%arg0: i32) -> (i32, i32) {
    %c0_i32 = arith.constant 0 : i32
    %c0_i32_0 = arith.constant 0 : i32
    %c0_i32_1 = arith.constant 0 : i32
    return %c0_i32, %c0_i32_0 : i32, i32
  }
  func.func @transform_7(%arg0: i32) -> (i32, i32) {
    %c0_i32 = arith.constant 0 : i32
    %c0_i32_0 = arith.constant 0 : i32
    %c0_i32_1 = arith.constant 0 : i32
    return %c0_i32, %c0_i32_0 : i32, i32
  }
  func.func @transform_8(%arg0: i32) -> (i32, i32) {
    %c0_i32 = arith.constant 0 : i32
    %c0_i32_0 = arith.constant 0 : i32
    %c0_i32_1 = arith.constant 0 : i32
    return %c0_i32, %c0_i32_0 : i32, i32
  }
  func.func @transform_9(%arg0: i32) -> (i32, i32) {
    %c0_i32 = arith.constant 0 : i32
    %c0_i32_0 = arith.constant 0 : i32
    return %arg0, %c0_i32 : i32, i32
  }
}

</mosaic_0001>

<llo_original>
// kernel: actor_forward.1
$region0: #{actor_forward.1}
  #allocation0 [shape = 'u32[]', space=smem, size = 0x4, offset = 0x4, fixed_abs, tag = 'smem constant byte address 0x4 - core index']
  #allocation1 [shape = 'u32[144,128]{1,0:T(1,128)}', space=vmem, size = 0x12000, scoped, tag = 'internal scratch']
  #allocation2 [shape = 'f32[1,33]{1,0:T(1,128)}', space=vmem, size = 0x200, scoped, tag = 'scratch operand']
  #allocation3 [shape = 'f32[1,33]{1,0:T(1,128)}', space=vmem, size = 0x200, scoped, tag = 'scratch operand']
  %s0 = inlined_call_operand.vmem [shape: f32[304,33], index: 0, kind: input, shape index: {}]
  %s1 = inlined_call_operand.vmem [shape: f32[1,33], index: 1, kind: input, shape index: {}]
  %s2 = inlined_call_operand.vmem [shape: f32[1,33], index: 2, kind: input, shape index: {}]
  %s3 = inlined_call_operand.vmem [shape: bf16[33,256], index: 3, kind: input, shape index: {}]
  %s4 = inlined_call_operand.vmem [shape: f32[1,256], index: 4, kind: input, shape index: {}]
  %s5 = inlined_call_operand.vmem [shape: bf16[256,128], index: 5, kind: input, shape index: {}]
  %s6 = inlined_call_operand.vmem [shape: f32[1,128], index: 6, kind: input, shape index: {}]
  %s7 = inlined_call_operand.vmem [shape: bf16[128,128], index: 7, kind: input, shape index: {}]
  %s8 = inlined_call_operand.vmem [shape: f32[1,128], index: 8, kind: input, shape index: {}]
  %s9 = inlined_call_operand.vmem [shape: f32[304,128], index: 9, kind: output, shape index: {}]
  %s10 = sld [smem:[#allocation0]]
  $region50: #{actor_forward.1} parent=0
    _
  %s12 = ssub.s32 1, %s10
  %s13 = scalar_select 0, %s12, %s10
  // Predicated region
  $region2: #{actor_forward.1} parent=0 // pred_check
    _
  $region3: #{actor_forward.1} parent=0 // pred_check_branch
    %15 = sbr.rel (0) target = $region5
  $region4: #{actor_forward.1} parent=0 // pred_region
    _
  $region5: #{actor_forward.1} parent=0 // pred_fallthru
    _
  // Predicated region
  $region6: #{actor_forward.1} parent=0 // pred_check
    _
  $region7: #{actor_forward.1} parent=0 // pred_check_branch
    %17 = sbr.rel (0) target = $region9
  $region8: #{actor_forward.1} parent=0 // pred_region
    _
  $region9: #{actor_forward.1} parent=0 // pred_fallthru
    _
  // Predicated region
  $region10: #{actor_forward.1} parent=0 // pred_check
    _
  $region11: #{actor_forward.1} parent=0 // pred_check_branch
    %19 = sbr.rel (0) target = $region13
  $region12: #{actor_forward.1} parent=0 // pred_region
    _
  $region13: #{actor_forward.1} parent=0 // pred_fallthru
    _
  // Predicated region
  $region14: #{actor_forward.1} parent=0 // pred_check
    _
  $region15: #{actor_forward.1} parent=0 // pred_check_branch
    %21 = sbr.rel (0) target = $region17
  $region16: #{actor_forward.1} parent=0 // pred_region
    _
  $region17: #{actor_forward.1} parent=0 // pred_fallthru
    _
  // Predicated region
  $region18: #{actor_forward.1} parent=0 // pred_check
    _
  $region19: #{actor_forward.1} parent=0 // pred_check_branch
    %23 = sbr.rel (0) target = $region21
  $region20: #{actor_forward.1} parent=0 // pred_region
    _
  $region21: #{actor_forward.1} parent=0 // pred_fallthru
    _
  // Predicated region
  $region22: #{actor_forward.1} parent=0 // pred_check
    _
  $region23: #{actor_forward.1} parent=0 // pred_check_branch
    %25 = sbr.rel (0) target = $region25
  $region24: #{actor_forward.1} parent=0 // pred_region
    _
  $region25: #{actor_forward.1} parent=0 // pred_fallthru
    _
  // Predicated region
  $region26: #{actor_forward.1} parent=0 // pred_check
    _
  $region27: #{actor_forward.1} parent=0 // pred_check_branch
    %27 = sbr.rel (0) target = $region29
  $region28: #{actor_forward.1} parent=0 // pred_region
    _
  $region29: #{actor_forward.1} parent=0 // pred_fallthru
    _
  // Predicated region
  $region30: #{actor_forward.1} parent=0 // pred_check
    _
  $region31: #{actor_forward.1} parent=0 // pred_check_branch
    %29 = sbr.rel (0) target = $region33
  $region32: #{actor_forward.1} parent=0 // pred_region
    _
  $region33: #{actor_forward.1} parent=0 // pred_fallthru
    _
  // Predicated region
  $region34: #{actor_forward.1} parent=0 // pred_check
    _
  $region35: #{actor_forward.1} parent=0 // pred_check_branch
    %31 = sbr.rel (0) target = $region37
  $region36: #{actor_forward.1} parent=0 // pred_region
    _
  $region37: #{actor_forward.1} parent=0 // pred_fallthru
    _
  %p33 = scmp.eq.s32.totalorder 0, 0
  // Predicated region
  $region38: #{actor_forward.1} parent=0 // pred_check
    %p34 = pneg %p33
  $region39: #{actor_forward.1} parent=0 // pred_check_branch
    %36 = sbr.rel (%p34) target = $region41
  $region40: #{actor_forward.1} parent=0 // pred_region
    %v37 = vld [vmem:[%s0] sm:$0xff]
    %v38 = vld [vmem:[%s0 + $0x8] sm:$0xff]
    %v39 = vld [vmem:[%s0 + $0x10] sm:$0xff]
    %v40 = vld [vmem:[%s0 + $0x18] sm:$0xff]
    %v41 = vld [vmem:[%s0 + $0x20] sm:$0xff]
    %v42 = vld [vmem:[%s0 + $0x28] sm:$0xff]
    %v43 = vld [vmem:[%s0 + $0x30] sm:$0xff]
    %v44 = vld [vmem:[%s0 + $0x38] sm:$0xff]
    %v45 = vld [vmem:[%s0 + $0x40] sm:$0xff]
    %v46 = vld [vmem:[%s0 + $0x48] sm:$0xff]
    %v47 = vld [vmem:[%s0 + $0x50] sm:$0xff]
    %v48 = vld [vmem:[%s0 + $0x58] sm:$0xff]
    %v49 = vld [vmem:[%s0 + $0x60] sm:$0xff]
    %v50 = vld [vmem:[%s0 + $0x68] sm:$0xff]
    %v51 = vld [vmem:[%s0 + $0x70] sm:$0xff]
    %v52 = vld [vmem:[%s0 + $0x78] sm:$0xff]
    %v53 = vld [vmem:[%s0 + $0x80] sm:$0xff]
    %v54 = vld [vmem:[%s0 + $0x88] sm:$0xff]
    %v55 = vld [vmem:[%s0 + $0x90] sm:$0xff]
    %v56 = vld [vmem:[%s0 + $0x98] sm:$0xff]
    %v57 = vld [vmem:[%s0 + $0xa0] sm:$0xff]
    %v58 = vld [vmem:[%s0 + $0xa8] sm:$0xff]
    %v59 = vld [vmem:[%s0 + $0xb0] sm:$0xff]
    %v60 = vld [vmem:[%s0 + $0xb8] sm:$0xff]
    %v61 = vld [vmem:[%s0 + $0xc0] sm:$0xff]
    %v62 = vld [vmem:[%s0 + $0xc8] sm:$0xff]
    %v63 = vld [vmem:[%s0 + $0xd0] sm:$0xff]
    %v64 = vld [vmem:[%s0 + $0xd8] sm:$0xff]
    %v65 = vld [vmem:[%s0 + $0xe0] sm:$0xff]
    %v66 = vld [vmem:[%s0 + $0xe8] sm:$0xff]
    %v67 = vld [vmem:[%s0 + $0xf0] sm:$0xff]
    %v68 = vld [vmem:[%s0 + $0xf8] sm:$0xff]
    %v69 = vld [vmem:[%s0 + $0x100] sm:$0xff]
    %v70 = vld [vmem:[%s0 + $0x108] sm:$0xff]
    %v71 = vld [vmem:[%s0 + $0x110] sm:$0xff]
    %v72 = vld [vmem:[%s0 + $0x118] sm:$0xff]
    %v73 = vld [vmem:[%s0 + $0x120] sm:$0xff]
    %v74 = vld [vmem:[%s0 + $0x128] sm:$0xff]
    %vm75 = vcmask 269312
    %v76 = vsel %vm75, %v37, 0.0
    %v77 = vsel %vm75, %v38, 0.0
    %v78 = vadd.f32 %v76, %v77
    %v79 = vsel %vm75, %v39, 0.0
    %v80 = vadd.f32 %v78, %v79
    %v81 = vsel %vm75, %v40, 0.0
    %v82 = vadd.f32 %v80, %v81
    %v83 = vsel %vm75, %v41, 0.0
    %v84 = vadd.f32 %v82, %v83
    %v85 = vsel %vm75, %v42, 0.0
    %v86 = vadd.f32 %v84, %v85
    %v87 = vsel %vm75, %v43, 0.0
    %v88 = vadd.f32 %v86, %v87
    %v89 = vsel %vm75, %v44, 0.0
    %v90 = vadd.f32 %v88, %v89
    %v91 = vsel %vm75, %v45, 0.0
    %v92 = vadd.f32 %v90, %v91
    %v93 = vsel %vm75, %v46, 0.0
    %v94 = vadd.f32 %v92, %v93
    %v95 = vsel %vm75, %v47, 0.0
    %v96 = vadd.f32 %v94, %v95
    %v97 = vsel %vm75, %v48, 0.0
    %v98 = vadd.f32 %v96, %v97
    %v99 = vsel %vm75, %v49, 0.0
    %v100 = vadd.f32 %v98, %v99
    %v101 = vsel %vm75, %v50, 0.0
    %v102 = vadd.f32 %v100, %v101
    %v103 = vsel %vm75, %v51, 0.0
    %v104 = vadd.f32 %v102, %v103
    %v105 = vsel %vm75, %v52, 0.0
    %v106 = vadd.f32 %v104, %v105
    %v107 = vsel %vm75, %v53, 0.0
    %v108 = vadd.f32 %v106, %v107
    %v109 = vsel %vm75, %v54, 0.0
    %v110 = vadd.f32 %v108, %v109
    %v111 = vsel %vm75, %v55, 0.0
    %v112 = vadd.f32 %v110, %v111
    %v113 = vsel %vm75, %v56, 0.0
    %v114 = vadd.f32 %v112, %v113
    %v115 = vsel %vm75, %v57, 0.0
    %v116 = vadd.f32 %v114, %v115
    %v117 = vsel %vm75, %v58, 0.0
    %v118 = vadd.f32 %v116, %v117
    %v119 = vsel %vm75, %v59, 0.0
    %v120 = vadd.f32 %v118, %v119
    %v121 = vsel %vm75, %v60, 0.0
    %v122 = vadd.f32 %v120, %v121
    %v123 = vsel %vm75, %v61, 0.0
    %v124 = vadd.f32 %v122, %v123
    %v125 = vsel %vm75, %v62, 0.0
    %v126 = vadd.f32 %v124, %v125
    %v127 = vsel %vm75, %v63, 0.0
    %v128 = vadd.f32 %v126, %v127
    %v129 = vsel %vm75, %v64, 0.0
    %v130 = vadd.f32 %v128, %v129
    %v131 = vsel %vm75, %v65, 0.0
    %v132 = vadd.f32 %v130, %v131
    %v133 = vsel %vm75, %v66, 0.0
    %v134 = vadd.f32 %v132, %v133
    %v135 = vsel %vm75, %v67, 0.0
    %v136 = vadd.f32 %v134, %v135
    %v137 = vsel %vm75, %v68, 0.0
    %v138 = vadd.f32 %v136, %v137
    %v139 = vsel %vm75, %v69, 0.0
    %v140 = vadd.f32 %v138, %v139
    %v141 = vsel %vm75, %v70, 0.0
    %v142 = vadd.f32 %v140, %v141
    %v143 = vsel %vm75, %v71, 0.0
    %v144 = vadd.f32 %v142, %v143
    %v145 = vsel %vm75, %v72, 0.0
    %v146 = vadd.f32 %v144, %v145
    %v147 = vsel %vm75, %v73, 0.0
    %v148 = vadd.f32 %v146, %v147
    %v149 = vsel %vm75, %v74, 0.0
    %v150 = vadd.f32 %v148, %v149
    %v151 = vrot.slane %v150, 4
    %v152 = vadd.f32 %v150, %v151
    %v153 = vrot.slane %v152, 2
    %v154 = vadd.f32 %v152, %v153
    %v155 = vrot.slane %v154, 1
    %v156 = vadd.f32 %v154, %v155
    %v157 = vmul.f32 %v156, 0.0033333334
    %v158 = vsub.f32 %v37, %v157
    %v159 = vsub.f32 %v38, %v157
    %v160 = vsub.f32 %v39, %v157
    %v161 = vsub.f32 %v40, %v157
    %v162 = vsub.f32 %v41, %v157
    %v163 = vsub.f32 %v42, %v157
    %v164 = vsub.f32 %v43, %v157
    %v165 = vsub.f32 %v44, %v157
    %v166 = vsub.f32 %v45, %v157
    %v167 = vsub.f32 %v46, %v157
    %v168 = vsub.f32 %v47, %v157
    %v169 = vsub.f32 %v48, %v157
    %v170 = vsub.f32 %v49, %v157
    %v171 = vsub.f32 %v50, %v157
    %v172 = vsub.f32 %v51, %v157
    %v173 = vsub.f32 %v52, %v157
    %v174 = vsub.f32 %v53, %v157
    %v175 = vsub.f32 %v54, %v157
    %v176 = vsub.f32 %v55, %v157
    %v177 = vsub.f32 %v56, %v157
    %v178 = vsub.f32 %v57, %v157
    %v179 = vsub.f32 %v58, %v157
    %v180 = vsub.f32 %v59, %v157
    %v181 = vsub.f32 %v60, %v157
    %v182 = vsub.f32 %v61, %v157
    %v183 = vsub.f32 %v62, %v157
    %v184 = vsub.f32 %v63, %v157
    %v185 = vsub.f32 %v64, %v157
    %v186 = vsub.f32 %v65, %v157
    %v187 = vsub.f32 %v66, %v157
    %v188 = vsub.f32 %v67, %v157
    %v189 = vsub.f32 %v68, %v157
    %v190 = vsub.f32 %v69, %v157
    %v191 = vsub.f32 %v70, %v157
    %v192 = vsub.f32 %v71, %v157
    %v193 = vsub.f32 %v72, %v157
    %v194 = vsub.f32 %v73, %v157
    %v195 = vsub.f32 %v74, %v157
    %v196 = vlaneseq
    %v197 = vshrl.u32 %v196, 7
    %v198 = vadd.s32 %v197, 8
    %v199 = vadd.s32 %v197, 16
    %v200 = vadd.s32 %v197, 24
    %v201 = vadd.s32 %v197, 32
    %v202 = vadd.s32 %v197, 40
    %v203 = vadd.s32 %v197, 48
    %v204 = vadd.s32 %v197, 56
    %v205 = vadd.s32 %v197, 64
    %v206 = vadd.s32 %v197, 72
    %v207 = vadd.s32 %v197, 80
    %v208 = vadd.s32 %v197, 88
    %v209 = vadd.s32 %v197, 96
    %v210 = vadd.s32 %v197, 104
    %v211 = vadd.s32 %v197, 112
    %v212 = vadd.s32 %v197, 120
    %v213 = vadd.s32 %v197, 128
    %v214 = vadd.s32 %v197, 136
    %v215 = vadd.s32 %v197, 144
    %v216 = vadd.s32 %v197, 152
    %v217 = vadd.s32 %v197, 160
    %v218 = vadd.s32 %v197, 168
    %v219 = vadd.s32 %v197, 176
    %v220 = vadd.s32 %v197, 184
    %v221 = vadd.s32 %v197, 192
    %v222 = vadd.s32 %v197, 200
    %v223 = vadd.s32 %v197, 208
    %v224 = vadd.s32 %v197, 216
    %v225 = vadd.s32 %v197, 224
    %v226 = vadd.s32 %v197, 232
    %v227 = vadd.s32 %v197, 240
    %v228 = vadd.s32 %v197, 248
    %v229 = vadd.s32 %v197, 256
    %v230 = vadd.s32 %v197, 264
    %v231 = vadd.s32 %v197, 272
    %v232 = vadd.s32 %v197, 280
    %v233 = vadd.s32 %v197, 288
    %v234 = vadd.s32 %v197, 296
    %vm235 = vcmp.lt.s32.totalorder %v197, 300
    %vm236 = vcmp.lt.s32.totalorder %v198, 300
    %vm237 = vcmp.lt.s32.totalorder %v199, 300
    %vm238 = vcmp.lt.s32.totalorder %v200, 300
    %vm239 = vcmp.lt.s32.totalorder %v201, 300
    %vm240 = vcmp.lt.s32.totalorder %v202, 300
    %vm241 = vcmp.lt.s32.totalorder %v203, 300
    %vm242 = vcmp.lt.s32.totalorder %v204, 300
    %vm243 = vcmp.lt.s32.totalorder %v205, 300
    %vm244 = vcmp.lt.s32.totalorder %v206, 300
    %vm245 = vcmp.lt.s32.totalorder %v207, 300
    %vm246 = vcmp.lt.s32.totalorder %v208, 300
    %vm247 = vcmp.lt.s32.totalorder %v209, 300
    %vm248 = vcmp.lt.s32.totalorder %v210, 300
    %vm249 = vcmp.lt.s32.totalorder %v211, 300
    %vm250 = vcmp.lt.s32.totalorder %v212, 300
    %vm251 = vcmp.lt.s32.totalorder %v213, 300
    %vm252 = vcmp.lt.s32.totalorder %v214, 300
    %vm253 = vcmp.lt.s32.totalorder %v215, 300
    %vm254 = vcmp.lt.s32.totalorder %v216, 300
    %vm255 = vcmp.lt.s32.totalorder %v217, 300
    %vm256 = vcmp.lt.s32.totalorder %v218, 300
    %vm257 = vcmp.lt.s32.totalorder %v219, 300
    %vm258 = vcmp.lt.s32.totalorder %v220, 300
    %vm259 = vcmp.lt.s32.totalorder %v221, 300
    %vm260 = vcmp.lt.s32.totalorder %v222, 300
    %vm261 = vcmp.lt.s32.totalorder %v223, 300
    %vm262 = vcmp.lt.s32.totalorder %v224, 300
    %vm263 = vcmp.lt.s32.totalorder %v225, 300
    %vm264 = vcmp.lt.s32.totalorder %v226, 300
    %vm265 = vcmp.lt.s32.totalorder %v227, 300
    %vm266 = vcmp.lt.s32.totalorder %v228, 300
    %vm267 = vcmp.lt.s32.totalorder %v229, 300
    %vm268 = vcmp.lt.s32.totalorder %v230, 300
    %vm269 = vcmp.lt.s32.totalorder %v231, 300
    %vm270 = vcmp.lt.s32.totalorder %v232, 300
    %vm271 = vcmp.lt.s32.totalorder %v233, 300
    %vm272 = vcmp.lt.s32.totalorder %v234, 300
    %v273 = vsel %vm235, %v158, 0.0
    %v274 = vsel %vm236, %v159, 0.0
    %v275 = vsel %vm237, %v160, 0.0
    %v276 = vsel %vm238, %v161, 0.0
    %v277 = vsel %vm239, %v162, 0.0
    %v278 = vsel %vm240, %v163, 0.0
    %v279 = vsel %vm241, %v164, 0.0
    %v280 = vsel %vm242, %v165, 0.0
    %v281 = vsel %vm243, %v166, 0.0
    %v282 = vsel %vm244, %v167, 0.0
    %v283 = vsel %vm245, %v168, 0.0
    %v284 = vsel %vm246, %v169, 0.0
    %v285 = vsel %vm247, %v170, 0.0
    %v286 = vsel %vm248, %v171, 0.0
    %v287 = vsel %vm249, %v172, 0.0
    %v288 = vsel %vm250, %v173, 0.0
    %v289 = vsel %vm251, %v174, 0.0
    %v290 = vsel %vm252, %v175, 0.0
    %v291 = vsel %vm253, %v176, 0.0
    %v292 = vsel %vm254, %v177, 0.0
    %v293 = vsel %vm255, %v178, 0.0
    %v294 = vsel %vm256, %v179, 0.0
    %v295 = vsel %vm257, %v180, 0.0
    %v296 = vsel %vm258, %v181, 0.0
    %v297 = vsel %vm259, %v182, 0.0
    %v298 = vsel %vm260, %v183, 0.0
    %v299 = vsel %vm261, %v184, 0.0
    %v300 = vsel %vm262, %v185, 0.0
    %v301 = vsel %vm263, %v186, 0.0
    %v302 = vsel %vm264, %v187, 0.0
    %v303 = vsel %vm265, %v188, 0.0
    %v304 = vsel %vm266, %v189, 0.0
    %v305 = vsel %vm267, %v190, 0.0
    %v306 = vsel %vm268, %v191, 0.0
    %v307 = vsel %vm269, %v192, 0.0
    %v308 = vsel %vm270, %v193, 0.0
    %v309 = vsel %vm271, %v194, 0.0
    %v310 = vsel %vm272, %v195, 0.0
    %v311 = vmul.f32 %v273, %v273
    %v312 = vmul.f32 %v274, %v274
    %v313 = vmul.f32 %v275, %v275
    %v314 = vmul.f32 %v276, %v276
    %v315 = vmul.f32 %v277, %v277
    %v316 = vmul.f32 %v278, %v278
    %v317 = vmul.f32 %v279, %v279
    %v318 = vmul.f32 %v280, %v280
    %v319 = vmul.f32 %v281, %v281
    %v320 = vmul.f32 %v282, %v282
    %v321 = vmul.f32 %v283, %v283
    %v322 = vmul.f32 %v284, %v284
    %v323 = vmul.f32 %v285, %v285
    %v324 = vmul.f32 %v286, %v286
    %v325 = vmul.f32 %v287, %v287
    %v326 = vmul.f32 %v288, %v288
    %v327 = vmul.f32 %v289, %v289
    %v328 = vmul.f32 %v290, %v290
    %v329 = vmul.f32 %v291, %v291
    %v330 = vmul.f32 %v292, %v292
    %v331 = vmul.f32 %v293, %v293
    %v332 = vmul.f32 %v294, %v294
    %v333 = vmul.f32 %v295, %v295
    %v334 = vmul.f32 %v296, %v296
    %v335 = vmul.f32 %v297, %v297
    %v336 = vmul.f32 %v298, %v298
    %v337 = vmul.f32 %v299, %v299
    %v338 = vmul.f32 %v300, %v300
    %v339 = vmul.f32 %v301, %v301
    %v340 = vmul.f32 %v302, %v302
    %v341 = vmul.f32 %v303, %v303
    %v342 = vmul.f32 %v304, %v304
    %v343 = vmul.f32 %v305, %v305
    %v344 = vmul.f32 %v306, %v306
    %v345 = vmul.f32 %v307, %v307
    %v346 = vmul.f32 %v308, %v308
    %v347 = vmul.f32 %v309, %v309
    %v348 = vmul.f32 %v310, %v310
    %v349 = vsel %vm75, %v311, 0.0
    %v350 = vsel %vm75, %v312, 0.0
    %v351 = vadd.f32 %v349, %v350
    %v352 = vsel %vm75, %v313, 0.0
    %v353 = vadd.f32 %v351, %v352
    %v354 = vsel %vm75, %v314, 0.0
    %v355 = vadd.f32 %v353, %v354
    %v356 = vsel %vm75, %v315, 0.0
    %v357 = vadd.f32 %v355, %v356
    %v358 = vsel %vm75, %v316, 0.0
    %v359 = vadd.f32 %v357, %v358
    %v360 = vsel %vm75, %v317, 0.0
    %v361 = vadd.f32 %v359, %v360
    %v362 = vsel %vm75, %v318, 0.0
    %v363 = vadd.f32 %v361, %v362
    %v364 = vsel %vm75, %v319, 0.0
    %v365 = vadd.f32 %v363, %v364
    %v366 = vsel %vm75, %v320, 0.0
    %v367 = vadd.f32 %v365, %v366
    %v368 = vsel %vm75, %v321, 0.0
    %v369 = vadd.f32 %v367, %v368
    %v370 = vsel %vm75, %v322, 0.0
    %v371 = vadd.f32 %v369, %v370
    %v372 = vsel %vm75, %v323, 0.0
    %v373 = vadd.f32 %v371, %v372
    %v374 = vsel %vm75, %v324, 0.0
    %v375 = vadd.f32 %v373, %v374
    %v376 = vsel %vm75, %v325, 0.0
    %v377 = vadd.f32 %v375, %v376
    %v378 = vsel %vm75, %v326, 0.0
    %v379 = vadd.f32 %v377, %v378
    %v380 = vsel %vm75, %v327, 0.0
    %v381 = vadd.f32 %v379, %v380
    %v382 = vsel %vm75, %v328, 0.0
    %v383 = vadd.f32 %v381, %v382
    %v384 = vsel %vm75, %v329, 0.0
    %v385 = vadd.f32 %v383, %v384
    %v386 = vsel %vm75, %v330, 0.0
    %v387 = vadd.f32 %v385, %v386
    %v388 = vsel %vm75, %v331, 0.0
    %v389 = vadd.f32 %v387, %v388
    %v390 = vsel %vm75, %v332, 0.0
    %v391 = vadd.f32 %v389, %v390
    %v392 = vsel %vm75, %v333, 0.0
    %v393 = vadd.f32 %v391, %v392
    %v394 = vsel %vm75, %v334, 0.0
    %v395 = vadd.f32 %v393, %v394
    %v396 = vsel %vm75, %v335, 0.0
    %v397 = vadd.f32 %v395, %v396
    %v398 = vsel %vm75, %v336, 0.0
    %v399 = vadd.f32 %v397, %v398
    %v400 = vsel %vm75, %v337, 0.0
    %v401 = vadd.f32 %v399, %v400
    %v402 = vsel %vm75, %v338, 0.0
    %v403 = vadd.f32 %v401, %v402
    %v404 = vsel %vm75, %v339, 0.0
    %v405 = vadd.f32 %v403, %v404
    %v406 = vsel %vm75, %v340, 0.0
    %v407 = vadd.f32 %v405, %v406
    %v408 = vsel %vm75, %v341, 0.0
    %v409 = vadd.f32 %v407, %v408
    %v410 = vsel %vm75, %v342, 0.0
    %v411 = vadd.f32 %v409, %v410
    %v412 = vsel %vm75, %v343, 0.0
    %v413 = vadd.f32 %v411, %v412
    %v414 = vsel %vm75, %v344, 0.0
    %v415 = vadd.f32 %v413, %v414
    %v416 = vsel %vm75, %v345, 0.0
    %v417 = vadd.f32 %v415, %v416
    %v418 = vsel %vm75, %v346, 0.0
    %v419 = vadd.f32 %v417, %v418
    %v420 = vsel %vm75, %v347, 0.0
    %v421 = vadd.f32 %v419, %v420
    %v422 = vsel %vm75, %v348, 0.0
    %v423 = vadd.f32 %v421, %v422
    %v424 = vrot.slane %v423, 4
    %v425 = vadd.f32 %v423, %v424
    %v426 = vrot.slane %v425, 2
    %v427 = vadd.f32 %v425, %v426
    %v428 = vrot.slane %v427, 1
    %v429 = vadd.f32 %v427, %v428
    %v430 = vmul.f32 %v429, 0.0033333334
    %v431 = vld [vmem:[%s1] sm:$0x1]
    %v432 = vadd.f32 %v430, 1e-05
    %v433 = vrsqrt.pop %v432
    %v434 = vmul.f32 %v431, %v433
    %vm435 = vcmask 262144
    %436 = vst.msk [vmem:[#allocation2] sm:$0x1] %vm435, %v434
    %v437 = vld [vmem:[%s2] sm:$0x1]
    %v438 = vmul.f32 %v157, %v434
    %v439 = vsub.f32 %v437, %v438
    %440 = vst.msk [vmem:[#allocation3] sm:$0x1] %vm435, %v439
  $region41: #{actor_forward.1} parent=0 // pred_fallthru
    _
  %v441 = vld [vmem:[%s0] sm:$0xff]
  %v442 = vld [vmem:[%s0 + $0x8] sm:$0xff]
  %v443 = vld [vmem:[%s0 + $0x10] sm:$0xff]
  %v444 = vld [vmem:[%s0 + $0x18] sm:$0xff]
  %v445 = vld [vmem:[%s0 + $0x20] sm:$0xff]
  %v446 = vld [vmem:[%s0 + $0x28] sm:$0xff]
  %v447 = vld [vmem:[%s0 + $0x30] sm:$0xff]
  %v448 = vld [vmem:[%s0 + $0x38] sm:$0xff]
  %v449 = vld [vmem:[%s0 + $0x40] sm:$0xff]
  %v450 = vld [vmem:[%s0 + $0x48] sm:$0xff]
  %v451 = vld [vmem:[%s0 + $0x50] sm:$0xff]
  %v452 = vld [vmem:[%s0 + $0x58] sm:$0xff]
  %v453 = vld [vmem:[%s0 + $0x60] sm:$0xff]
  %v454 = vld [vmem:[%s0 + $0x68] sm:$0xff]
  %v455 = vld [vmem:[%s0 + $0x70] sm:$0xff]
  %v456 = vld [vmem:[%s0 + $0x78] sm:$0xff]
  %v457 = vld [vmem:[%s0 + $0x80] sm:$0xff]
  %v458 = vld [vmem:[%s0 + $0x88] sm:$0xff]
  %v459 = vld [vmem:[%s0 + $0x90] sm:$0xff]
  %v460 = vld [vmem:[%s0 + $0x98] sm:$0xff]
  %v461 = vld [vmem:[%s0 + $0xa0] sm:$0xff]
  %v462 = vld [vmem:[%s0 + $0xa8] sm:$0xff]
  %v463 = vld [vmem:[%s0 + $0xb0] sm:$0xff]
  %v464 = vld [vmem:[%s0 + $0xb8] sm:$0xff]
  %v465 = vld [vmem:[%s0 + $0xc0] sm:$0xff]
  %v466 = vld [vmem:[%s0 + $0xc8] sm:$0xff]
  %v467 = vld [vmem:[%s0 + $0xd0] sm:$0xff]
  %v468 = vld [vmem:[%s0 + $0xd8] sm:$0xff]
  %v469 = vld [vmem:[%s0 + $0xe0] sm:$0xff]
  %v470 = vld [vmem:[%s0 + $0xe8] sm:$0xff]
  %v471 = vld [vmem:[%s0 + $0xf0] sm:$0xff]
  %v472 = vld [vmem:[%s0 + $0xf8] sm:$0xff]
  %v473 = vld [vmem:[%s0 + $0x100] sm:$0xff]
  %v474 = vld [vmem:[%s0 + $0x108] sm:$0xff]
  %v475 = vld [vmem:[%s0 + $0x110] sm:$0xff]
  %v476 = vld [vmem:[%s0 + $0x118] sm:$0xff]
  %v477 = vld [vmem:[%s0 + $0x120] sm:$0xff]
  %v478 = vld [vmem:[%s0 + $0x128] sm:$0xff]
  %v479 = vld [vmem:[#allocation2] sm:$0x1]
  %v481 = vlaneseq
  %v482 = vshrl.u32 %v481, 7
  %v483 = vsub.s32 0, %v482
  %v484 = vrot.slane %v479, %v483
  %v486 = vmul.f32 %v441, %v484
  %v487 = vmul.f32 %v442, %v484
  %v488 = vmul.f32 %v443, %v484
  %v489 = vmul.f32 %v444, %v484
  %v490 = vmul.f32 %v445, %v484
  %v491 = vmul.f32 %v446, %v484
  %v492 = vmul.f32 %v447, %v484
  %v493 = vmul.f32 %v448, %v484
  %v494 = vmul.f32 %v449, %v484
  %v495 = vmul.f32 %v450, %v484
  %v496 = vmul.f32 %v451, %v484
  %v497 = vmul.f32 %v452, %v484
  %v498 = vmul.f32 %v453, %v484
  %v499 = vmul.f32 %v454, %v484
  %v500 = vmul.f32 %v455, %v484
  %v501 = vmul.f32 %v456, %v484
  %v502 = vmul.f32 %v457, %v484
  %v503 = vmul.f32 %v458, %v484
  %v504 = vmul.f32 %v459, %v484
  %v505 = vmul.f32 %v460, %v484
  %v506 = vmul.f32 %v461, %v484
  %v507 = vmul.f32 %v462, %v484
  %v508 = vmul.f32 %v463, %v484
  %v509 = vmul.f32 %v464, %v484
  %v510 = vmul.f32 %v465, %v484
  %v511 = vmul.f32 %v466, %v484
  %v512 = vmul.f32 %v467, %v484
  %v513 = vmul.f32 %v468, %v484
  %v514 = vmul.f32 %v469, %v484
  %v515 = vmul.f32 %v470, %v484
  %v516 = vmul.f32 %v471, %v484
  %v517 = vmul.f32 %v472, %v484
  %v518 = vmul.f32 %v473, %v484
  %v519 = vmul.f32 %v474, %v484
  %v520 = vmul.f32 %v475, %v484
  %v521 = vmul.f32 %v476, %v484
  %v522 = vmul.f32 %v477, %v484
  %v523 = vmul.f32 %v478, %v484
  %v524 = vld [vmem:[#allocation3] sm:$0x1]
  %v526 = vlaneseq
  %v527 = vshrl.u32 %v526, 7
  %v528 = vsub.s32 0, %v527
  %v529 = vrot.slane %v524, %v528
  %v531 = vadd.f32 %v486, %v529
  %v532 = vadd.f32 %v487, %v529
  %v533 = vadd.f32 %v488, %v529
  %v534 = vadd.f32 %v489, %v529
  %v535 = vadd.f32 %v490, %v529
  %v536 = vadd.f32 %v491, %v529
  %v537 = vadd.f32 %v492, %v529
  %v538 = vadd.f32 %v493, %v529
  %v539 = vadd.f32 %v494, %v529
  %v540 = vadd.f32 %v495, %v529
  %v541 = vadd.f32 %v496, %v529
  %v542 = vadd.f32 %v497, %v529
  %v543 = vadd.f32 %v498, %v529
  %v544 = vadd.f32 %v499, %v529
  %v545 = vadd.f32 %v500, %v529
  %v546 = vadd.f32 %v501, %v529
  %v547 = vadd.f32 %v502, %v529
  %v548 = vadd.f32 %v503, %v529
  %v549 = vadd.f32 %v504, %v529
  %v550 = vadd.f32 %v505, %v529
  %v551 = vadd.f32 %v506, %v529
  %v552 = vadd.f32 %v507, %v529
  %v553 = vadd.f32 %v508, %v529
  %v554 = vadd.f32 %v509, %v529
  %v555 = vadd.f32 %v510, %v529
  %v556 = vadd.f32 %v511, %v529
  %v557 = vadd.f32 %v512, %v529
  %v558 = vadd.f32 %v513, %v529
  %v559 = vadd.f32 %v514, %v529
  %v560 = vadd.f32 %v515, %v529
  %v561 = vadd.f32 %v516, %v529
  %v562 = vadd.f32 %v517, %v529
  %v563 = vadd.f32 %v518, %v529
  %v564 = vadd.f32 %v519, %v529
  %v565 = vadd.f32 %v520, %v529
  %v566 = vadd.f32 %v521, %v529
  %v567 = vadd.f32 %v522, %v529
  %v568 = vadd.f32 %v523, %v529
  %v569 = vpack.c.bf16 %v532, %v531
  %v570 = vpack.c.bf16 %v534, %v533
  %v571 = vpack.c.bf16 %v536, %v535
  %v572 = vpack.c.bf16 %v538, %v537
  %v573 = vpack.c.bf16 %v540, %v539
  %v574 = vpack.c.bf16 %v542, %v541
  %v575 = vpack.c.bf16 %v544, %v543
  %v576 = vpack.c.bf16 %v546, %v545
  %v577 = vpack.c.bf16 %v548, %v547
  %v578 = vpack.c.bf16 %v550, %v549
  %v579 = vpack.c.bf16 %v552, %v551
  %v580 = vpack.c.bf16 %v554, %v553
  %v581 = vpack.c.bf16 %v556, %v555
  %v582 = vpack.c.bf16 %v558, %v557
  %v583 = vpack.c.bf16 %v560, %v559
  %v584 = vpack.c.bf16 %v562, %v561
  %v585 = vpack.c.bf16 %v564, %v563
  %v586 = vpack.c.bf16 %v566, %v565
  %v587 = vpack.c.bf16 %v568, %v567
  %v588 = vld [vmem:[%s3] sm:$0xff]
  %v589 = vld [vmem:[%s3 + $0x8] sm:$0xff]
  %v590 = vld [vmem:[%s3 + $0x10] sm:$0xff]
  %v591 = vld [vmem:[%s3 + $0x18] sm:$0xff]
  %v592 = vld [vmem:[%s3 + $0x20] sm:$0x11]
  %v593 = vld [vmem:[%s4] sm:$0x3]
  %v595 = vlaneseq
  %v596 = vshrl.u32 %v595, 7
  %v597 = vsub.s32 0, %v596
  %v598 = vrot.slane %v593, %v597
  %v599 = vlaneseq
  %v600 = vshrl.u32 %v599, 7
  %v601 = vsub.s32 1, %v600
  %v602 = vrot.slane %v593, %v601
  %v610 = vunpack.c.l.b16 %v588
  %v611 = vunpack.c.h.b16 %v588
  %v612 = vunpack.c.l.b16 %v589
  %v613 = vunpack.c.h.b16 %v589
  %v614 = vunpack.c.l.b16 %v590
  %v615 = vunpack.c.h.b16 %v590
  %v616 = vunpack.c.l.b16 %v591
  %v617 = vunpack.c.h.b16 %v591
  %v618 = vunpack.c.l.b16 %v592
  %v619 = vunpack.c.h.b16 %v592
  %v620 = vpack.c.b16 %v612, %v610
  %v621 = vpack.c.b16 %v613, %v611
  %v622 = vpack.c.b16 %v616, %v614
  %v623 = vpack.c.b16 %v617, %v615
  %v624 = vpack.c.b16 %v618, %v618
  %v625 = vpack.c.b16 %v619, %v619
  %vm630 = vcmask 269312
  %v632 = vsel %vm630, %v569, 0
  %v635 = vsel %vm630, %v570, 0
  %v638 = vsel %vm630, %v571, 0
  %v641 = vsel %vm630, %v572, 0
  %v644 = vsel %vm630, %v573, 0
  %v647 = vsel %vm630, %v574, 0
  %v650 = vsel %vm630, %v575, 0
  %v653 = vsel %vm630, %v576, 0
  %v656 = vsel %vm630, %v577, 0
  %v659 = vsel %vm630, %v578, 0
  %v662 = vsel %vm630, %v579, 0
  %v665 = vsel %vm630, %v580, 0
  %v668 = vsel %vm630, %v581, 0
  %v671 = vsel %vm630, %v582, 0
  %v674 = vsel %vm630, %v583, 0
  %v677 = vsel %vm630, %v584, 0
  %v680 = vsel %vm630, %v585, 0
  %v683 = vsel %vm630, %v586, 0
  %v686 = vsel %vm630, %v587, 0
  %vm688 = vcmask 1040384
  %v689 = vsel 0, 4294967295, 65535
  %v690 = vsel %vm688, %v689, 0
  %v692 = vand.u32 %v624, %v690
  %v695 = vand.u32 %v625, %v690
  %697 = vmatprep.subr.bf16.mxu0 0
  %698 = vmatpush1.bf16.msra.mxu0 0
  %699 = vmatprep.subr.bf16.mxu0 0
  %700 = vmatpush1.bf16.msra.mxu0 0
  %701 = vmatprep.subr.bf16.mxu0 0
  %702 = vmatpush1.bf16.msra.mxu0 0
  %703 = vmatprep.subr.bf16.mxu0 0
  %704 = vmatpush1.bf16.msra.mxu0 0
  %705 = vmatprep.subr.bf16.mxu0 0
  %706 = vmatpush1.bf16.msra.mxu0 0
  %707 = vmatprep.subr.bf16.mxu0 %v695
  %708 = vmatpush1.bf16.msra.mxu0 %v692
  %709 = vmatprep.subr.bf16.mxu0 %v623
  %710 = vmatpush1.bf16.msra.mxu0 %v622
  %711 = vmatprep.subr.bf16.mxu0 %v621
  %712 = vmatpush1.bf16.msra.mxu0 %v620
  %713 = vmatprep.subr.bf16.mxu0 0
  %714 = vmatpush2.bf16.msra.mxu0 0
  %715 = vmatprep.subr.bf16.mxu0 0
  %716 = vmatpush2.bf16.msra.mxu0 0
  %717 = vmatprep.subr.bf16.mxu0 0
  %718 = vmatpush2.bf16.msra.mxu0 0
  %719 = vmatprep.subr.bf16.mxu0 0
  %720 = vmatpush2.bf16.msra.mxu0 0
  %721 = vmatprep.subr.bf16.mxu0 0
  %722 = vmatpush2.bf16.msra.mxu0 0
  %723 = vmatprep.subr.bf16.mxu0 0
  %724 = vmatpush2.bf16.msra.mxu0 0
  %725 = vmatprep.subr.bf16.mxu0 0
  %726 = vmatpush2.bf16.msra.mxu0 0
  %727 = vmatprep.subr.bf16.mxu0 0
  %728 = vmatpush2.bf16.msra.mxu0 0
  %729 = vmatprep.mubr.bf16.mxu0 0
  %730 = vmatmul.mubr.bf16.gmra.mxu0 %v632
  %v731 = vpop.f32.mrf.mxu0
  %v732 = vadd.f32 %v598, %v731
  %v733 = vpop.f32.mrf.mxu0
  %v734 = vadd.f32 %v602, %v733
  %v735 = vpop.f32.mrf.mxu0
  %v736 = vadd.f32 %v598, %v735
  %v737 = vpop.f32.mrf.mxu0
  %v738 = vadd.f32 %v602, %v737
  %739 = vmatprep.mubr.bf16.mxu0 0
  %740 = vmatmul.mubr.bf16.gmra.mxu0 %v635
  %v741 = vpop.f32.mrf.mxu0
  %v742 = vadd.f32 %v598, %v741
  %v743 = vpop.f32.mrf.mxu0
  %v744 = vadd.f32 %v602, %v743
  %v745 = vpop.f32.mrf.mxu0
  %v746 = vadd.f32 %v598, %v745
  %v747 = vpop.f32.mrf.mxu0
  %v748 = vadd.f32 %v602, %v747
  %749 = vmatprep.mubr.bf16.mxu0 0
  %750 = vmatmul.mubr.bf16.gmra.mxu0 %v638
  %v751 = vpop.f32.mrf.mxu0
  %v752 = vadd.f32 %v598, %v751
  %v753 = vpop.f32.mrf.mxu0
  %v754 = vadd.f32 %v602, %v753
  %v755 = vpop.f32.mrf.mxu0
  %v756 = vadd.f32 %v598, %v755
  %v757 = vpop.f32.mrf.mxu0
  %v758 = vadd.f32 %v602, %v757
  %759 = vmatprep.mubr.bf16.mxu0 0
  %760 = vmatmul.mubr.bf16.gmra.mxu0 %v641
  %v761 = vpop.f32.mrf.mxu0
  %v762 = vadd.f32 %v598, %v761
  %v763 = vpop.f32.mrf.mxu0
  %v764 = vadd.f32 %v602, %v763
  %v765 = vpop.f32.mrf.mxu0
  %v766 = vadd.f32 %v598, %v765
  %v767 = vpop.f32.mrf.mxu0
  %v768 = vadd.f32 %v602, %v767
  %769 = vmatprep.mubr.bf16.mxu0 0
  %770 = vmatmul.mubr.bf16.gmra.mxu0 %v644
  %v771 = vpop.f32.mrf.mxu0
  %v772 = vadd.f32 %v598, %v771
  %v773 = vpop.f32.mrf.mxu0
  %v774 = vadd.f32 %v602, %v773
  %v775 = vpop.f32.mrf.mxu0
  %v776 = vadd.f32 %v598, %v775
  %v777 = vpop.f32.mrf.mxu0
  %v778 = vadd.f32 %v602, %v777
  %779 = vmatprep.mubr.bf16.mxu0 0
  %780 = vmatmul.mubr.bf16.gmra.mxu0 %v647
  %v781 = vpop.f32.mrf.mxu0
  %v782 = vadd.f32 %v598, %v781
  %v783 = vpop.f32.mrf.mxu0
  %v784 = vadd.f32 %v602, %v783
  %v785 = vpop.f32.mrf.mxu0
  %v786 = vadd.f32 %v598, %v785
  %v787 = vpop.f32.mrf.mxu0
  %v788 = vadd.f32 %v602, %v787
  %789 = vmatprep.mubr.bf16.mxu0 0
  %790 = vmatmul.mubr.bf16.gmra.mxu0 %v650
  %v791 = vpop.f32.mrf.mxu0
  %v792 = vadd.f32 %v598, %v791
  %v793 = vpop.f32.mrf.mxu0
  %v794 = vadd.f32 %v602, %v793
  %v795 = vpop.f32.mrf.mxu0
  %v796 = vadd.f32 %v598, %v795
  %v797 = vpop.f32.mrf.mxu0
  %v798 = vadd.f32 %v602, %v797
  %799 = vmatprep.mubr.bf16.mxu0 0
  %800 = vmatmul.mubr.bf16.gmra.mxu0 %v653
  %v801 = vpop.f32.mrf.mxu0
  %v802 = vadd.f32 %v598, %v801
  %v803 = vpop.f32.mrf.mxu0
  %v804 = vadd.f32 %v602, %v803
  %v805 = vpop.f32.mrf.mxu0
  %v806 = vadd.f32 %v598, %v805
  %v807 = vpop.f32.mrf.mxu0
  %v808 = vadd.f32 %v602, %v807
  %809 = vmatprep.mubr.bf16.mxu0 0
  %810 = vmatmul.mubr.bf16.gmra.mxu0 %v656
  %v811 = vpop.f32.mrf.mxu0
  %v812 = vadd.f32 %v598, %v811
  %v813 = vpop.f32.mrf.mxu0
  %v814 = vadd.f32 %v602, %v813
  %v815 = vpop.f32.mrf.mxu0
  %v816 = vadd.f32 %v598, %v815
  %v817 = vpop.f32.mrf.mxu0
  %v818 = vadd.f32 %v602, %v817
  %819 = vmatprep.mubr.bf16.mxu0 0
  %820 = vmatmul.mubr.bf16.gmra.mxu0 %v659
  %v821 = vpop.f32.mrf.mxu0
  %v822 = vadd.f32 %v598, %v821
  %v823 = vpop.f32.mrf.mxu0
  %v824 = vadd.f32 %v602, %v823
  %v825 = vpop.f32.mrf.mxu0
  %v826 = vadd.f32 %v598, %v825
  %v827 = vpop.f32.mrf.mxu0
  %v828 = vadd.f32 %v602, %v827
  %829 = vmatprep.mubr.bf16.mxu0 0
  %830 = vmatmul.mubr.bf16.gmra.mxu0 %v662
  %v831 = vpop.f32.mrf.mxu0
  %v832 = vadd.f32 %v598, %v831
  %v833 = vpop.f32.mrf.mxu0
  %v834 = vadd.f32 %v602, %v833
  %v835 = vpop.f32.mrf.mxu0
  %v836 = vadd.f32 %v598, %v835
  %v837 = vpop.f32.mrf.mxu0
  %v838 = vadd.f32 %v602, %v837
  %839 = vmatprep.mubr.bf16.mxu0 0
  %840 = vmatmul.mubr.bf16.gmra.mxu0 %v665
  %v841 = vpop.f32.mrf.mxu0
  %v842 = vadd.f32 %v598, %v841
  %v843 = vpop.f32.mrf.mxu0
  %v844 = vadd.f32 %v602, %v843
  %v845 = vpop.f32.mrf.mxu0
  %v846 = vadd.f32 %v598, %v845
  %v847 = vpop.f32.mrf.mxu0
  %v848 = vadd.f32 %v602, %v847
  %849 = vmatprep.mubr.bf16.mxu0 0
  %850 = vmatmul.mubr.bf16.gmra.mxu0 %v668
  %v851 = vpop.f32.mrf.mxu0
  %v852 = vadd.f32 %v598, %v851
  %v853 = vpop.f32.mrf.mxu0
  %v854 = vadd.f32 %v602, %v853
  %v855 = vpop.f32.mrf.mxu0
  %v856 = vadd.f32 %v598, %v855
  %v857 = vpop.f32.mrf.mxu0
  %v858 = vadd.f32 %v602, %v857
  %859 = vmatprep.mubr.bf16.mxu0 0
  %860 = vmatmul.mubr.bf16.gmra.mxu0 %v671
  %v861 = vpop.f32.mrf.mxu0
  %v862 = vadd.f32 %v598, %v861
  %v863 = vpop.f32.mrf.mxu0
  %v864 = vadd.f32 %v602, %v863
  %v865 = vpop.f32.mrf.mxu0
  %v866 = vadd.f32 %v598, %v865
  %v867 = vpop.f32.mrf.mxu0
  %v868 = vadd.f32 %v602, %v867
  %869 = vmatprep.mubr.bf16.mxu0 0
  %870 = vmatmul.mubr.bf16.gmra.mxu0 %v674
  %v871 = vpop.f32.mrf.mxu0
  %v872 = vadd.f32 %v598, %v871
  %v873 = vpop.f32.mrf.mxu0
  %v874 = vadd.f32 %v602, %v873
  %v875 = vpop.f32.mrf.mxu0
  %v876 = vadd.f32 %v598, %v875
  %v877 = vpop.f32.mrf.mxu0
  %v878 = vadd.f32 %v602, %v877
  %879 = vmatprep.mubr.bf16.mxu0 0
  %880 = vmatmul.mubr.bf16.gmra.mxu0 %v677
  %v881 = vpop.f32.mrf.mxu0
  %v882 = vadd.f32 %v598, %v881
  %v883 = vpop.f32.mrf.mxu0
  %v884 = vadd.f32 %v602, %v883
  %v885 = vpop.f32.mrf.mxu0
  %v886 = vadd.f32 %v598, %v885
  %v887 = vpop.f32.mrf.mxu0
  %v888 = vadd.f32 %v602, %v887
  %889 = vmatprep.mubr.bf16.mxu0 0
  %890 = vmatmul.mubr.bf16.gmra.mxu0 %v680
  %v891 = vpop.f32.mrf.mxu0
  %v892 = vadd.f32 %v598, %v891
  %v893 = vpop.f32.mrf.mxu0
  %v894 = vadd.f32 %v602, %v893
  %v895 = vpop.f32.mrf.mxu0
  %v896 = vadd.f32 %v598, %v895
  %v897 = vpop.f32.mrf.mxu0
  %v898 = vadd.f32 %v602, %v897
  %899 = vmatprep.mubr.bf16.mxu0 0
  %900 = vmatmul.mubr.bf16.gmra.mxu0 %v683
  %v901 = vpop.f32.mrf.mxu0
  %v902 = vadd.f32 %v598, %v901
  %v903 = vpop.f32.mrf.mxu0
  %v904 = vadd.f32 %v602, %v903
  %v905 = vpop.f32.mrf.mxu0
  %v906 = vadd.f32 %v598, %v905
  %v907 = vpop.f32.mrf.mxu0
  %v908 = vadd.f32 %v602, %v907
  %909 = vmatprep.mubr.bf16.mxu0 0
  %910 = vmatmul.mubr.bf16.gmra.mxu0 %v686
  %v911 = vpop.f32.mrf.mxu0
  %v912 = vadd.f32 %v598, %v911
  %v913 = vpop.f32.mrf.mxu0
  %v914 = vadd.f32 %v602, %v913
  %v915 = vpop.f32.mrf.mxu0
  %v916 = vadd.f32 %v598, %v915
  %v917 = vpop.f32.mrf.mxu0
  %v918 = vadd.f32 %v602, %v917
  %919 = vdwg.mxu0
  %v920 = vmul.f32 %v732, 0.01
  %v921 = vmul.f32 %v734, 0.01
  %v922 = vmul.f32 %v736, 0.01
  %v923 = vmul.f32 %v738, 0.01
  %v924 = vmul.f32 %v742, 0.01
  %v925 = vmul.f32 %v744, 0.01
  %v926 = vmul.f32 %v746, 0.01
  %v927 = vmul.f32 %v748, 0.01
  %v928 = vmul.f32 %v752, 0.01
  %v929 = vmul.f32 %v754, 0.01
  %v930 = vmul.f32 %v756, 0.01
  %v931 = vmul.f32 %v758, 0.01
  %v932 = vmul.f32 %v762, 0.01
  %v933 = vmul.f32 %v764, 0.01
  %v934 = vmul.f32 %v766, 0.01
  %v935 = vmul.f32 %v768, 0.01
  %v936 = vmul.f32 %v772, 0.01
  %v937 = vmul.f32 %v774, 0.01
  %v938 = vmul.f32 %v776, 0.01
  %v939 = vmul.f32 %v778, 0.01
  %v940 = vmul.f32 %v782, 0.01
  %v941 = vmul.f32 %v784, 0.01
  %v942 = vmul.f32 %v786, 0.01
  %v943 = vmul.f32 %v788, 0.01
  %v944 = vmul.f32 %v792, 0.01
  %v945 = vmul.f32 %v794, 0.01
  %v946 = vmul.f32 %v796, 0.01
  %v947 = vmul.f32 %v798, 0.01
  %v948 = vmul.f32 %v802, 0.01
  %v949 = vmul.f32 %v804, 0.01
  %v950 = vmul.f32 %v806, 0.01
  %v951 = vmul.f32 %v808, 0.01
  %v952 = vmul.f32 %v812, 0.01
  %v953 = vmul.f32 %v814, 0.01
  %v954 = vmul.f32 %v816, 0.01
  %v955 = vmul.f32 %v818, 0.01
  %v956 = vmul.f32 %v822, 0.01
  %v957 = vmul.f32 %v824, 0.01
  %v958 = vmul.f32 %v826, 0.01
  %v959 = vmul.f32 %v828, 0.01
  %v960 = vmul.f32 %v832, 0.01
  %v961 = vmul.f32 %v834, 0.01
  %v962 = vmul.f32 %v836, 0.01
  %v963 = vmul.f32 %v838, 0.01
  %v964 = vmul.f32 %v842, 0.01
  %v965 = vmul.f32 %v844, 0.01
  %v966 = vmul.f32 %v846, 0.01
  %v967 = vmul.f32 %v848, 0.01
  %v968 = vmul.f32 %v852, 0.01
  %v969 = vmul.f32 %v854, 0.01
  %v970 = vmul.f32 %v856, 0.01
  %v971 = vmul.f32 %v858, 0.01
  %v972 = vmul.f32 %v862, 0.01
  %v973 = vmul.f32 %v864, 0.01
  %v974 = vmul.f32 %v866, 0.01
  %v975 = vmul.f32 %v868, 0.01
  %v976 = vmul.f32 %v872, 0.01
  %v977 = vmul.f32 %v874, 0.01
  %v978 = vmul.f32 %v876, 0.01
  %v979 = vmul.f32 %v878, 0.01
  %v980 = vmul.f32 %v882, 0.01
  %v981 = vmul.f32 %v884, 0.01
  %v982 = vmul.f32 %v886, 0.01
  %v983 = vmul.f32 %v888, 0.01
  %v984 = vmul.f32 %v892, 0.01
  %v985 = vmul.f32 %v894, 0.01
  %v986 = vmul.f32 %v896, 0.01
  %v987 = vmul.f32 %v898, 0.01
  %v988 = vmul.f32 %v902, 0.01
  %v989 = vmul.f32 %v904, 0.01
  %v990 = vmul.f32 %v906, 0.01
  %v991 = vmul.f32 %v908, 0.01
  %v992 = vmul.f32 %v912, 0.01
  %v993 = vmul.f32 %v914, 0.01
  %v994 = vmul.f32 %v916, 0.01
  %v995 = vmul.f32 %v918, 0.01
  %v996 = vmax.f32 %v732, %v920
  %v997 = vmax.f32 %v734, %v921
  %v998 = vmax.f32 %v736, %v922
  %v999 = vmax.f32 %v738, %v923
  %v1000 = vmax.f32 %v742, %v924
  %v1001 = vmax.f32 %v744, %v925
  %v1002 = vmax.f32 %v746, %v926
  %v1003 = vmax.f32 %v748, %v927
  %v1004 = vmax.f32 %v752, %v928
  %v1005 = vmax.f32 %v754, %v929
  %v1006 = vmax.f32 %v756, %v930
  %v1007 = vmax.f32 %v758, %v931
  %v1008 = vmax.f32 %v762, %v932
  %v1009 = vmax.f32 %v764, %v933
  %v1010 = vmax.f32 %v766, %v934
  %v1011 = vmax.f32 %v768, %v935
  %v1012 = vmax.f32 %v772, %v936
  %v1013 = vmax.f32 %v774, %v937
  %v1014 = vmax.f32 %v776, %v938
  %v1015 = vmax.f32 %v778, %v939
  %v1016 = vmax.f32 %v782, %v940
  %v1017 = vmax.f32 %v784, %v941
  %v1018 = vmax.f32 %v786, %v942
  %v1019 = vmax.f32 %v788, %v943
  %v1020 = vmax.f32 %v792, %v944
  %v1021 = vmax.f32 %v794, %v945
  %v1022 = vmax.f32 %v796, %v946
  %v1023 = vmax.f32 %v798, %v947
  %v1024 = vmax.f32 %v802, %v948
  %v1025 = vmax.f32 %v804, %v949
  %v1026 = vmax.f32 %v806, %v950
  %v1027 = vmax.f32 %v808, %v951
  %v1028 = vmax.f32 %v812, %v952
  %v1029 = vmax.f32 %v814, %v953
  %v1030 = vmax.f32 %v816, %v954
  %v1031 = vmax.f32 %v818, %v955
  %v1032 = vmax.f32 %v822, %v956
  %v1033 = vmax.f32 %v824, %v957
  %v1034 = vmax.f32 %v826, %v958
  %v1035 = vmax.f32 %v828, %v959
  %v1036 = vmax.f32 %v832, %v960
  %v1037 = vmax.f32 %v834, %v961
  %v1038 = vmax.f32 %v836, %v962
  %v1039 = vmax.f32 %v838, %v963
  %v1040 = vmax.f32 %v842, %v964
  %v1041 = vmax.f32 %v844, %v965
  %v1042 = vmax.f32 %v846, %v966
  %v1043 = vmax.f32 %v848, %v967
  %v1044 = vmax.f32 %v852, %v968
  %v1045 = vmax.f32 %v854, %v969
  %v1046 = vmax.f32 %v856, %v970
  %v1047 = vmax.f32 %v858, %v971
  %v1048 = vmax.f32 %v862, %v972
  %v1049 = vmax.f32 %v864, %v973
  %v1050 = vmax.f32 %v866, %v974
  %v1051 = vmax.f32 %v868, %v975
  %v1052 = vmax.f32 %v872, %v976
  %v1053 = vmax.f32 %v874, %v977
  %v1054 = vmax.f32 %v876, %v978
  %v1055 = vmax.f32 %v878, %v979
  %v1056 = vmax.f32 %v882, %v980
  %v1057 = vmax.f32 %v884, %v981
  %v1058 = vmax.f32 %v886, %v982
  %v1059 = vmax.f32 %v888, %v983
  %v1060 = vmax.f32 %v892, %v984
  %v1061 = vmax.f32 %v894, %v985
  %v1062 = vmax.f32 %v896, %v986
  %v1063 = vmax.f32 %v898, %v987
  %v1064 = vmax.f32 %v902, %v988
  %v1065 = vmax.f32 %v904, %v989
  %v1066 = vmax.f32 %v906, %v990
  %v1067 = vmax.f32 %v908, %v991
  %v1068 = vmax.f32 %v912, %v992
  %v1069 = vmax.f32 %v914, %v993
  %v1070 = vmax.f32 %v916, %v994
  %v1071 = vmax.f32 %v918, %v995
  %v1072 = vpack.c.bf16 %v998, %v996
  %v1073 = vpack.c.bf16 %v999, %v997
  %v1074 = vpack.c.bf16 %v1002, %v1000
  %v1075 = vpack.c.bf16 %v1003, %v1001
  %v1076 = vpack.c.bf16 %v1006, %v1004
  %v1077 = vpack.c.bf16 %v1007, %v1005
  %v1078 = vpack.c.bf16 %v1010, %v1008
  %v1079 = vpack.c.bf16 %v1011, %v1009
  %v1080 = vpack.c.bf16 %v1014, %v1012
  %v1081 = vpack.c.bf16 %v1015, %v1013
  %v1082 = vpack.c.bf16 %v1018, %v1016
  %v1083 = vpack.c.bf16 %v1019, %v1017
  %v1084 = vpack.c.bf16 %v1022, %v1020
  %v1085 = vpack.c.bf16 %v1023, %v1021
  %v1086 = vpack.c.bf16 %v1026, %v1024
  %v1087 = vpack.c.bf16 %v1027, %v1025
  %v1088 = vpack.c.bf16 %v1030, %v1028
  %v1089 = vpack.c.bf16 %v1031, %v1029
  %v1090 = vpack.c.bf16 %v1034, %v1032
  %v1091 = vpack.c.bf16 %v1035, %v1033
  %v1092 = vpack.c.bf16 %v1038, %v1036
  %v1093 = vpack.c.bf16 %v1039, %v1037
  %v1094 = vpack.c.bf16 %v1042, %v1040
  %v1095 = vpack.c.bf16 %v1043, %v1041
  %v1096 = vpack.c.bf16 %v1046, %v1044
  %v1097 = vpack.c.bf16 %v1047, %v1045
  %v1098 = vpack.c.bf16 %v1050, %v1048
  %v1099 = vpack.c.bf16 %v1051, %v1049
  %v1100 = vpack.c.bf16 %v1054, %v1052
  %v1101 = vpack.c.bf16 %v1055, %v1053
  %v1102 = vpack.c.bf16 %v1058, %v1056
  %v1103 = vpack.c.bf16 %v1059, %v1057
  %v1104 = vpack.c.bf16 %v1062, %v1060
  %v1105 = vpack.c.bf16 %v1063, %v1061
  %v1106 = vpack.c.bf16 %v1066, %v1064
  %v1107 = vpack.c.bf16 %v1067, %v1065
  %v1108 = vpack.c.bf16 %v1070, %v1068
  %v1109 = vpack.c.bf16 %v1071, %v1069
  %v1110 = vld [vmem:[%s5] sm:$0xf]
  %v1111 = vld [vmem:[%s5 + $0x4] sm:$0xf]
  %v1112 = vld [vmem:[%s5 + $0x8] sm:$0xf]
  %v1113 = vld [vmem:[%s5 + $0xc] sm:$0xf]
  %v1114 = vld [vmem:[%s5 + $0x10] sm:$0xf]
  %v1115 = vld [vmem:[%s5 + $0x14] sm:$0xf]
  %v1116 = vld [vmem:[%s5 + $0x18] sm:$0xf]
  %v1117 = vld [vmem:[%s5 + $0x1c] sm:$0xf]
  %v1118 = vld [vmem:[%s5 + $0x20] sm:$0xf]
  %v1119 = vld [vmem:[%s5 + $0x24] sm:$0xf]
  %v1120 = vld [vmem:[%s5 + $0x28] sm:$0xf]
  %v1121 = vld [vmem:[%s5 + $0x2c] sm:$0xf]
  %v1122 = vld [vmem:[%s5 + $0x30] sm:$0xf]
  %v1123 = vld [vmem:[%s5 + $0x34] sm:$0xf]
  %v1124 = vld [vmem:[%s5 + $0x38] sm:$0xf]
  %v1125 = vld [vmem:[%s5 + $0x3c] sm:$0xf]
  %v1126 = vld [vmem:[%s5 + $0x40] sm:$0xf]
  %v1127 = vld [vmem:[%s5 + $0x44] sm:$0xf]
  %v1128 = vld [vmem:[%s5 + $0x48] sm:$0xf]
  %v1129 = vld [vmem:[%s5 + $0x4c] sm:$0xf]
  %v1130 = vld [vmem:[%s5 + $0x50] sm:$0xf]
  %v1131 = vld [vmem:[%s5 + $0x54] sm:$0xf]
  %v1132 = vld [vmem:[%s5 + $0x58] sm:$0xf]
  %v1133 = vld [vmem:[%s5 + $0x5c] sm:$0xf]
  %v1134 = vld [vmem:[%s5 + $0x60] sm:$0xf]
  %v1135 = vld [vmem:[%s5 + $0x64] sm:$0xf]
  %v1136 = vld [vmem:[%s5 + $0x68] sm:$0xf]
  %v1137 = vld [vmem:[%s5 + $0x6c] sm:$0xf]
  %v1138 = vld [vmem:[%s5 + $0x70] sm:$0xf]
  %v1139 = vld [vmem:[%s5 + $0x74] sm:$0xf]
  %v1140 = vld [vmem:[%s5 + $0x78] sm:$0xf]
  %v1141 = vld [vmem:[%s5 + $0x7c] sm:$0xf]
  %v1142 = vld [vmem:[%s6] sm:$0x1]
  %v1144 = vlaneseq
  %v1145 = vshrl.u32 %v1144, 7
  %v1146 = vsub.s32 0, %v1145
  %v1147 = vrot.slane %v1142, %v1146
  %v1181 = vunpack.c.l.b16 %v1110
  %v1182 = vunpack.c.l.b16 %v1111
  %v1183 = vunpack.c.l.b16 %v1112
  %v1184 = vunpack.c.l.b16 %v1113
  %v1185 = vunpack.c.l.b16 %v1114
  %v1186 = vunpack.c.l.b16 %v1115
  %v1187 = vunpack.c.l.b16 %v1116
  %v1188 = vunpack.c.l.b16 %v1117
  %v1189 = vunpack.c.l.b16 %v1118
  %v1190 = vunpack.c.l.b16 %v1119
  %v1191 = vunpack.c.l.b16 %v1120
  %v1192 = vunpack.c.l.b16 %v1121
  %v1193 = vunpack.c.l.b16 %v1122
  %v1194 = vunpack.c.l.b16 %v1123
  %v1195 = vunpack.c.l.b16 %v1124
  %v1196 = vunpack.c.l.b16 %v1125
  %v1197 = vunpack.c.l.b16 %v1126
  %v1198 = vunpack.c.l.b16 %v1127
  %v1199 = vunpack.c.l.b16 %v1128
  %v1200 = vunpack.c.l.b16 %v1129
  %v1201 = vunpack.c.l.b16 %v1130
  %v1202 = vunpack.c.l.b16 %v1131
  %v1203 = vunpack.c.l.b16 %v1132
  %v1204 = vunpack.c.l.b16 %v1133
  %v1205 = vunpack.c.l.b16 %v1134
  %v1206 = vunpack.c.l.b16 %v1135
  %v1207 = vunpack.c.l.b16 %v1136
  %v1208 = vunpack.c.l.b16 %v1137
  %v1209 = vunpack.c.l.b16 %v1138
  %v1210 = vunpack.c.l.b16 %v1139
  %v1211 = vunpack.c.l.b16 %v1140
  %v1212 = vunpack.c.l.b16 %v1141
  %v1213 = vpack.c.b16 %v1182, %v1181
  %v1214 = vpack.c.b16 %v1184, %v1183
  %v1215 = vpack.c.b16 %v1186, %v1185
  %v1216 = vpack.c.b16 %v1188, %v1187
  %v1217 = vpack.c.b16 %v1190, %v1189
  %v1218 = vpack.c.b16 %v1192, %v1191
  %v1219 = vpack.c.b16 %v1194, %v1193
  %v1220 = vpack.c.b16 %v1196, %v1195
  %v1221 = vpack.c.b16 %v1198, %v1197
  %v1222 = vpack.c.b16 %v1200, %v1199
  %v1223 = vpack.c.b16 %v1202, %v1201
  %v1224 = vpack.c.b16 %v1204, %v1203
  %v1225 = vpack.c.b16 %v1206, %v1205
  %v1226 = vpack.c.b16 %v1208, %v1207
  %v1227 = vpack.c.b16 %v1210, %v1209
  %v1228 = vpack.c.b16 %v1212, %v1211
  %1245 = vmatprep.subr.bf16.mxu0 0
  %1246 = vmatpush1.bf16.msra.mxu0 %v1220
  %1247 = vmatprep.subr.bf16.mxu0 0
  %1248 = vmatpush1.bf16.msra.mxu0 %v1219
  %1249 = vmatprep.subr.bf16.mxu0 0
  %1250 = vmatpush1.bf16.msra.mxu0 %v1218
  %1251 = vmatprep.subr.bf16.mxu0 0
  %1252 = vmatpush1.bf16.msra.mxu0 %v1217
  %1253 = vmatprep.subr.bf16.mxu0 0
  %1254 = vmatpush1.bf16.msra.mxu0 %v1216
  %1255 = vmatprep.subr.bf16.mxu0 0
  %1256 = vmatpush1.bf16.msra.mxu0 %v1215
  %1257 = vmatprep.subr.bf16.mxu0 0
  %1258 = vmatpush1.bf16.msra.mxu0 %v1214
  %1259 = vmatprep.subr.bf16.mxu0 0
  %1260 = vmatpush1.bf16.msra.mxu0 %v1213
  %1261 = vmatprep.subr.bf16.mxu0 0
  %1262 = vmatpush2.bf16.msra.mxu0 %v1228
  %1263 = vmatprep.subr.bf16.mxu0 0
  %1264 = vmatpush2.bf16.msra.mxu0 %v1227
  %1265 = vmatprep.subr.bf16.mxu0 0
  %1266 = vmatpush2.bf16.msra.mxu0 %v1226
  %1267 = vmatprep.subr.bf16.mxu0 0
  %1268 = vmatpush2.bf16.msra.mxu0 %v1225
  %1269 = vmatprep.subr.bf16.mxu0 0
  %1270 = vmatpush2.bf16.msra.mxu0 %v1224
  %1271 = vmatprep.subr.bf16.mxu0 0
  %1272 = vmatpush2.bf16.msra.mxu0 %v1223
  %1273 = vmatprep.subr.bf16.mxu0 0
  %1274 = vmatpush2.bf16.msra.mxu0 %v1222
  %1275 = vmatprep.subr.bf16.mxu0 0
  %1276 = vmatpush2.bf16.msra.mxu0 %v1221
  %1277 = vmatprep.mubr.bf16.mxu0 %v1073
  %1278 = vmatmul.mubr.bf16.gmra.mxu0 %v1072
  %v1279 = vpop.f32.mrf.mxu0
  %v1280 = vadd.f32 %v1147, %v1279
  %v1281 = vpop.f32.mrf.mxu0
  %v1282 = vpop.f32.mrf.mxu0
  %v1283 = vadd.f32 %v1147, %v1282
  %v1284 = vpop.f32.mrf.mxu0
  %1285 = vmatprep.mubr.bf16.mxu0 %v1075
  %1286 = vmatmul.mubr.bf16.gmra.mxu0 %v1074
  %v1287 = vpop.f32.mrf.mxu0
  %v1288 = vadd.f32 %v1147, %v1287
  %v1289 = vpop.f32.mrf.mxu0
  %v1290 = vpop.f32.mrf.mxu0
  %v1291 = vadd.f32 %v1147, %v1290
  %v1292 = vpop.f32.mrf.mxu0
  %1293 = vmatprep.mubr.bf16.mxu0 %v1077
  %1294 = vmatmul.mubr.bf16.gmra.mxu0 %v1076
  %v1295 = vpop.f32.mrf.mxu0
  %v1296 = vadd.f32 %v1147, %v1295
  %v1297 = vpop.f32.mrf.mxu0
  %v1298 = vpop.f32.mrf.mxu0
  %v1299 = vadd.f32 %v1147, %v1298
  %v1300 = vpop.f32.mrf.mxu0
  %1301 = vmatprep.mubr.bf16.mxu0 %v1079
  %1302 = vmatmul.mubr.bf16.gmra.mxu0 %v1078
  %v1303 = vpop.f32.mrf.mxu0
  %v1304 = vadd.f32 %v1147, %v1303
  %v1305 = vpop.f32.mrf.mxu0
  %v1306 = vpop.f32.mrf.mxu0
  %v1307 = vadd.f32 %v1147, %v1306
  %v1308 = vpop.f32.mrf.mxu0
  %1309 = vmatprep.mubr.bf16.mxu0 %v1081
  %1310 = vmatmul.mubr.bf16.gmra.mxu0 %v1080
  %v1311 = vpop.f32.mrf.mxu0
  %v1312 = vadd.f32 %v1147, %v1311
  %v1313 = vpop.f32.mrf.mxu0
  %v1314 = vpop.f32.mrf.mxu0
  %v1315 = vadd.f32 %v1147, %v1314
  %v1316 = vpop.f32.mrf.mxu0
  %1317 = vmatprep.mubr.bf16.mxu0 %v1083
  %1318 = vmatmul.mubr.bf16.gmra.mxu0 %v1082
  %v1319 = vpop.f32.mrf.mxu0
  %v1320 = vadd.f32 %v1147, %v1319
  %v1321 = vpop.f32.mrf.mxu0
  %v1322 = vpop.f32.mrf.mxu0
  %v1323 = vadd.f32 %v1147, %v1322
  %v1324 = vpop.f32.mrf.mxu0
  %1325 = vmatprep.mubr.bf16.mxu0 %v1085
  %1326 = vmatmul.mubr.bf16.gmra.mxu0 %v1084
  %v1327 = vpop.f32.mrf.mxu0
  %v1328 = vadd.f32 %v1147, %v1327
  %v1329 = vpop.f32.mrf.mxu0
  %v1330 = vpop.f32.mrf.mxu0
  %v1331 = vadd.f32 %v1147, %v1330
  %v1332 = vpop.f32.mrf.mxu0
  %1333 = vmatprep.mubr.bf16.mxu0 %v1087
  %1334 = vmatmul.mubr.bf16.gmra.mxu0 %v1086
  %v1335 = vpop.f32.mrf.mxu0
  %v1336 = vadd.f32 %v1147, %v1335
  %v1337 = vpop.f32.mrf.mxu0
  %v1338 = vpop.f32.mrf.mxu0
  %v1339 = vadd.f32 %v1147, %v1338
  %v1340 = vpop.f32.mrf.mxu0
  %1341 = vmatprep.mubr.bf16.mxu0 %v1089
  %1342 = vmatmul.mubr.bf16.gmra.mxu0 %v1088
  %v1343 = vpop.f32.mrf.mxu0
  %v1344 = vadd.f32 %v1147, %v1343
  %v1345 = vpop.f32.mrf.mxu0
  %v1346 = vpop.f32.mrf.mxu0
  %v1347 = vadd.f32 %v1147, %v1346
  %v1348 = vpop.f32.mrf.mxu0
  %1349 = vmatprep.mubr.bf16.mxu0 %v1091
  %1350 = vmatmul.mubr.bf16.gmra.mxu0 %v1090
  %v1351 = vpop.f32.mrf.mxu0
  %v1352 = vadd.f32 %v1147, %v1351
  %v1353 = vpop.f32.mrf.mxu0
  %v1354 = vpop.f32.mrf.mxu0
  %v1355 = vadd.f32 %v1147, %v1354
  %v1356 = vpop.f32.mrf.mxu0
  %1357 = vmatprep.mubr.bf16.mxu0 %v1093
  %1358 = vmatmul.mubr.bf16.gmra.mxu0 %v1092
  %v1359 = vpop.f32.mrf.mxu0
  %v1360 = vadd.f32 %v1147, %v1359
  %v1361 = vpop.f32.mrf.mxu0
  %v1362 = vpop.f32.mrf.mxu0
  %v1363 = vadd.f32 %v1147, %v1362
  %v1364 = vpop.f32.mrf.mxu0
  %1365 = vmatprep.mubr.bf16.mxu0 %v1095
  %1366 = vmatmul.mubr.bf16.gmra.mxu0 %v1094
  %v1367 = vpop.f32.mrf.mxu0
  %v1368 = vadd.f32 %v1147, %v1367
  %v1369 = vpop.f32.mrf.mxu0
  %v1370 = vpop.f32.mrf.mxu0
  %v1371 = vadd.f32 %v1147, %v1370
  %v1372 = vpop.f32.mrf.mxu0
  %1373 = vmatprep.mubr.bf16.mxu0 %v1097
  %1374 = vmatmul.mubr.bf16.gmra.mxu0 %v1096
  %v1375 = vpop.f32.mrf.mxu0
  %v1376 = vadd.f32 %v1147, %v1375
  %v1377 = vpop.f32.mrf.mxu0
  %v1378 = vpop.f32.mrf.mxu0
  %v1379 = vadd.f32 %v1147, %v1378
  %v1380 = vpop.f32.mrf.mxu0
  %1381 = vmatprep.mubr.bf16.mxu0 %v1099
  %1382 = vmatmul.mubr.bf16.gmra.mxu0 %v1098
  %v1383 = vpop.f32.mrf.mxu0
  %v1384 = vadd.f32 %v1147, %v1383
  %v1385 = vpop.f32.mrf.mxu0
  %v1386 = vpop.f32.mrf.mxu0
  %v1387 = vadd.f32 %v1147, %v1386
  %v1388 = vpop.f32.mrf.mxu0
  %1389 = vmatprep.mubr.bf16.mxu0 %v1101
  %1390 = vmatmul.mubr.bf16.gmra.mxu0 %v1100
  %v1391 = vpop.f32.mrf.mxu0
  %v1392 = vadd.f32 %v1147, %v1391
  %v1393 = vpop.f32.mrf.mxu0
  %v1394 = vpop.f32.mrf.mxu0
  %v1395 = vadd.f32 %v1147, %v1394
  %v1396 = vpop.f32.mrf.mxu0
  %1397 = vmatprep.mubr.bf16.mxu0 %v1103
  %1398 = vmatmul.mubr.bf16.gmra.mxu0 %v1102
  %v1399 = vpop.f32.mrf.mxu0
  %v1400 = vadd.f32 %v1147, %v1399
  %v1401 = vpop.f32.mrf.mxu0
  %v1402 = vpop.f32.mrf.mxu0
  %v1403 = vadd.f32 %v1147, %v1402
  %v1404 = vpop.f32.mrf.mxu0
  %1405 = vmatprep.mubr.bf16.mxu0 %v1105
  %1406 = vmatmul.mubr.bf16.gmra.mxu0 %v1104
  %v1407 = vpop.f32.mrf.mxu0
  %v1408 = vadd.f32 %v1147, %v1407
  %v1409 = vpop.f32.mrf.mxu0
  %v1410 = vpop.f32.mrf.mxu0
  %v1411 = vadd.f32 %v1147, %v1410
  %v1412 = vpop.f32.mrf.mxu0
  %1413 = vmatprep.mubr.bf16.mxu0 %v1107
  %1414 = vmatmul.mubr.bf16.gmra.mxu0 %v1106
  %v1415 = vpop.f32.mrf.mxu0
  %v1416 = vadd.f32 %v1147, %v1415
  %v1417 = vpop.f32.mrf.mxu0
  %v1418 = vpop.f32.mrf.mxu0
  %v1419 = vadd.f32 %v1147, %v1418
  %v1420 = vpop.f32.mrf.mxu0
  %1421 = vmatprep.mubr.bf16.mxu0 %v1109
  %1422 = vmatmul.mubr.bf16.gmra.mxu0 %v1108
  %v1423 = vpop.f32.mrf.mxu0
  %v1424 = vadd.f32 %v1147, %v1423
  %v1425 = vpop.f32.mrf.mxu0
  %v1426 = vpop.f32.mrf.mxu0
  %v1427 = vadd.f32 %v1147, %v1426
  %v1428 = vpop.f32.mrf.mxu0
  %1429 = vdwg.mxu0
  %v1430 = vmul.f32 %v1280, 0.01
  %v1431 = vmul.f32 %v1283, 0.01
  %v1432 = vmul.f32 %v1288, 0.01
  %v1433 = vmul.f32 %v1291, 0.01
  %v1434 = vmul.f32 %v1296, 0.01
  %v1435 = vmul.f32 %v1299, 0.01
  %v1436 = vmul.f32 %v1304, 0.01
  %v1437 = vmul.f32 %v1307, 0.01
  %v1438 = vmul.f32 %v1312, 0.01
  %v1439 = vmul.f32 %v1315, 0.01
  %v1440 = vmul.f32 %v1320, 0.01
  %v1441 = vmul.f32 %v1323, 0.01
  %v1442 = vmul.f32 %v1328, 0.01
  %v1443 = vmul.f32 %v1331, 0.01
  %v1444 = vmul.f32 %v1336, 0.01
  %v1445 = vmul.f32 %v1339, 0.01
  %v1446 = vmul.f32 %v1344, 0.01
  %v1447 = vmul.f32 %v1347, 0.01
  %v1448 = vmul.f32 %v1352, 0.01
  %v1449 = vmul.f32 %v1355, 0.01
  %v1450 = vmul.f32 %v1360, 0.01
  %v1451 = vmul.f32 %v1363, 0.01
  %v1452 = vmul.f32 %v1368, 0.01
  %v1453 = vmul.f32 %v1371, 0.01
  %v1454 = vmul.f32 %v1376, 0.01
  %v1455 = vmul.f32 %v1379, 0.01
  %v1456 = vmul.f32 %v1384, 0.01
  %v1457 = vmul.f32 %v1387, 0.01
  %v1458 = vmul.f32 %v1392, 0.01
  %v1459 = vmul.f32 %v1395, 0.01
  %v1460 = vmul.f32 %v1400, 0.01
  %v1461 = vmul.f32 %v1403, 0.01
  %v1462 = vmul.f32 %v1408, 0.01
  %v1463 = vmul.f32 %v1411, 0.01
  %v1464 = vmul.f32 %v1416, 0.01
  %v1465 = vmul.f32 %v1419, 0.01
  %v1466 = vmul.f32 %v1424, 0.01
  %v1467 = vmul.f32 %v1427, 0.01
  %v1468 = vmax.f32 %v1280, %v1430
  %v1469 = vmax.f32 %v1283, %v1431
  %v1470 = vmax.f32 %v1288, %v1432
  %v1471 = vmax.f32 %v1291, %v1433
  %v1472 = vmax.f32 %v1296, %v1434
  %v1473 = vmax.f32 %v1299, %v1435
  %v1474 = vmax.f32 %v1304, %v1436
  %v1475 = vmax.f32 %v1307, %v1437
  %v1476 = vmax.f32 %v1312, %v1438
  %v1477 = vmax.f32 %v1315, %v1439
  %v1478 = vmax.f32 %v1320, %v1440
  %v1479 = vmax.f32 %v1323, %v1441
  %v1480 = vmax.f32 %v1328, %v1442
  %v1481 = vmax.f32 %v1331, %v1443
  %v1482 = vmax.f32 %v1336, %v1444
  %v1483 = vmax.f32 %v1339, %v1445
  %v1484 = vmax.f32 %v1344, %v1446
  %v1485 = vmax.f32 %v1347, %v1447
  %v1486 = vmax.f32 %v1352, %v1448
  %v1487 = vmax.f32 %v1355, %v1449
  %v1488 = vmax.f32 %v1360, %v1450
  %v1489 = vmax.f32 %v1363, %v1451
  %v1490 = vmax.f32 %v1368, %v1452
  %v1491 = vmax.f32 %v1371, %v1453
  %v1492 = vmax.f32 %v1376, %v1454
  %v1493 = vmax.f32 %v1379, %v1455
  %v1494 = vmax.f32 %v1384, %v1456
  %v1495 = vmax.f32 %v1387, %v1457
  %v1496 = vmax.f32 %v1392, %v1458
  %v1497 = vmax.f32 %v1395, %v1459
  %v1498 = vmax.f32 %v1400, %v1460
  %v1499 = vmax.f32 %v1403, %v1461
  %v1500 = vmax.f32 %v1408, %v1462
  %v1501 = vmax.f32 %v1411, %v1463
  %v1502 = vmax.f32 %v1416, %v1464
  %v1503 = vmax.f32 %v1419, %v1465
  %v1504 = vmax.f32 %v1424, %v1466
  %v1505 = vmax.f32 %v1427, %v1467
  %v1506 = vpack.c.bf16 %v1469, %v1468
  %v1507 = vpack.c.bf16 %v1471, %v1470
  %v1508 = vpack.c.bf16 %v1473, %v1472
  %v1509 = vpack.c.bf16 %v1475, %v1474
  %v1510 = vpack.c.bf16 %v1477, %v1476
  %v1511 = vpack.c.bf16 %v1479, %v1478
  %v1512 = vpack.c.bf16 %v1481, %v1480
  %v1513 = vpack.c.bf16 %v1483, %v1482
  %v1514 = vpack.c.bf16 %v1485, %v1484
  %v1515 = vpack.c.bf16 %v1487, %v1486
  %v1516 = vpack.c.bf16 %v1489, %v1488
  %v1517 = vpack.c.bf16 %v1491, %v1490
  %v1518 = vpack.c.bf16 %v1493, %v1492
  %v1519 = vpack.c.bf16 %v1495, %v1494
  %v1520 = vpack.c.bf16 %v1497, %v1496
  %v1521 = vpack.c.bf16 %v1499, %v1498
  %v1522 = vpack.c.bf16 %v1501, %v1500
  %v1523 = vpack.c.bf16 %v1503, %v1502
  %v1524 = vpack.c.bf16 %v1505, %v1504
  %v1525 = vld [vmem:[%s7] sm:$0xf]
  %v1526 = vld [vmem:[%s7 + $0x4] sm:$0xf]
  %v1527 = vld [vmem:[%s7 + $0x8] sm:$0xf]
  %v1528 = vld [vmem:[%s7 + $0xc] sm:$0xf]
  %v1529 = vld [vmem:[%s7 + $0x10] sm:$0xf]
  %v1530 = vld [vmem:[%s7 + $0x14] sm:$0xf]
  %v1531 = vld [vmem:[%s7 + $0x18] sm:$0xf]
  %v1532 = vld [vmem:[%s7 + $0x1c] sm:$0xf]
  %v1533 = vld [vmem:[%s7 + $0x20] sm:$0xf]
  %v1534 = vld [vmem:[%s7 + $0x24] sm:$0xf]
  %v1535 = vld [vmem:[%s7 + $0x28] sm:$0xf]
  %v1536 = vld [vmem:[%s7 + $0x2c] sm:$0xf]
  %v1537 = vld [vmem:[%s7 + $0x30] sm:$0xf]
  %v1538 = vld [vmem:[%s7 + $0x34] sm:$0xf]
  %v1539 = vld [vmem:[%s7 + $0x38] sm:$0xf]
  %v1540 = vld [vmem:[%s7 + $0x3c] sm:$0xf]
  %v1541 = vld [vmem:[%s8] sm:$0x1]
  %v1543 = vlaneseq
  %v1544 = vshrl.u32 %v1543, 7
  %v1545 = vsub.s32 0, %v1544
  %v1546 = vrot.slane %v1541, %v1545
  %v1564 = vunpack.c.l.b16 %v1525
  %v1565 = vunpack.c.l.b16 %v1526
  %v1566 = vunpack.c.l.b16 %v1527
  %v1567 = vunpack.c.l.b16 %v1528
  %v1568 = vunpack.c.l.b16 %v1529
  %v1569 = vunpack.c.l.b16 %v1530
  %v1570 = vunpack.c.l.b16 %v1531
  %v1571 = vunpack.c.l.b16 %v1532
  %v1572 = vunpack.c.l.b16 %v1533
  %v1573 = vunpack.c.l.b16 %v1534
  %v1574 = vunpack.c.l.b16 %v1535
  %v1575 = vunpack.c.l.b16 %v1536
  %v1576 = vunpack.c.l.b16 %v1537
  %v1577 = vunpack.c.l.b16 %v1538
  %v1578 = vunpack.c.l.b16 %v1539
  %v1579 = vunpack.c.l.b16 %v1540
  %v1580 = vpack.c.b16 %v1565, %v1564
  %v1581 = vpack.c.b16 %v1567, %v1566
  %v1582 = vpack.c.b16 %v1569, %v1568
  %v1583 = vpack.c.b16 %v1571, %v1570
  %v1584 = vpack.c.b16 %v1573, %v1572
  %v1585 = vpack.c.b16 %v1575, %v1574
  %v1586 = vpack.c.b16 %v1577, %v1576
  %v1587 = vpack.c.b16 %v1579, %v1578
  %1596 = vmatprep.subr.bf16.mxu0 0
  %1597 = vmatpush1.bf16.msra.mxu0 %v1587
  %1598 = vmatprep.subr.bf16.mxu0 0
  %1599 = vmatpush1.bf16.msra.mxu0 %v1586
  %1600 = vmatprep.subr.bf16.mxu0 0
  %1601 = vmatpush1.bf16.msra.mxu0 %v1585
  %1602 = vmatprep.subr.bf16.mxu0 0
  %1603 = vmatpush1.bf16.msra.mxu0 %v1584
  %1604 = vmatprep.subr.bf16.mxu0 0
  %1605 = vmatpush1.bf16.msra.mxu0 %v1583
  %1606 = vmatprep.subr.bf16.mxu0 0
  %1607 = vmatpush1.bf16.msra.mxu0 %v1582
  %1608 = vmatprep.subr.bf16.mxu0 0
  %1609 = vmatpush1.bf16.msra.mxu0 %v1581
  %1610 = vmatprep.subr.bf16.mxu0 0
  %1611 = vmatpush1.bf16.msra.mxu0 %v1580
  %1612 = vmatprep.subr.bf16.mxu0 0
  %1613 = vmatpush2.bf16.msra.mxu0 0
  %1614 = vmatprep.subr.bf16.mxu0 0
  %1615 = vmatpush2.bf16.msra.mxu0 0
  %1616 = vmatprep.subr.bf16.mxu0 0
  %1617 = vmatpush2.bf16.msra.mxu0 0
  %1618 = vmatprep.subr.bf16.mxu0 0
  %1619 = vmatpush2.bf16.msra.mxu0 0
  %1620 = vmatprep.subr.bf16.mxu0 0
  %1621 = vmatpush2.bf16.msra.mxu0 0
  %1622 = vmatprep.subr.bf16.mxu0 0
  %1623 = vmatpush2.bf16.msra.mxu0 0
  %1624 = vmatprep.subr.bf16.mxu0 0
  %1625 = vmatpush2.bf16.msra.mxu0 0
  %1626 = vmatprep.subr.bf16.mxu0 0
  %1627 = vmatpush2.bf16.msra.mxu0 0
  %1628 = vmatprep.mubr.bf16.mxu0 0
  %1629 = vmatmul.mubr.bf16.gmra.mxu0 %v1506
  %v1630 = vpop.f32.mrf.mxu0
  %v1631 = vadd.f32 %v1546, %v1630
  %v1632 = vpop.f32.mrf.mxu0
  %v1633 = vpop.f32.mrf.mxu0
  %v1634 = vadd.f32 %v1546, %v1633
  %v1635 = vpop.f32.mrf.mxu0
  %1636 = vmatprep.mubr.bf16.mxu0 0
  %1637 = vmatmul.mubr.bf16.gmra.mxu0 %v1507
  %v1638 = vpop.f32.mrf.mxu0
  %v1639 = vadd.f32 %v1546, %v1638
  %v1640 = vpop.f32.mrf.mxu0
  %v1641 = vpop.f32.mrf.mxu0
  %v1642 = vadd.f32 %v1546, %v1641
  %v1643 = vpop.f32.mrf.mxu0
  %1644 = vmatprep.mubr.bf16.mxu0 0
  %1645 = vmatmul.mubr.bf16.gmra.mxu0 %v1508
  %v1646 = vpop.f32.mrf.mxu0
  %v1647 = vadd.f32 %v1546, %v1646
  %v1648 = vpop.f32.mrf.mxu0
  %v1649 = vpop.f32.mrf.mxu0
  %v1650 = vadd.f32 %v1546, %v1649
  %v1651 = vpop.f32.mrf.mxu0
  %1652 = vmatprep.mubr.bf16.mxu0 0
  %1653 = vmatmul.mubr.bf16.gmra.mxu0 %v1509
  %v1654 = vpop.f32.mrf.mxu0
  %v1655 = vadd.f32 %v1546, %v1654
  %v1656 = vpop.f32.mrf.mxu0
  %v1657 = vpop.f32.mrf.mxu0
  %v1658 = vadd.f32 %v1546, %v1657
  %v1659 = vpop.f32.mrf.mxu0
  %1660 = vmatprep.mubr.bf16.mxu0 0
  %1661 = vmatmul.mubr.bf16.gmra.mxu0 %v1510
  %v1662 = vpop.f32.mrf.mxu0
  %v1663 = vadd.f32 %v1546, %v1662
  %v1664 = vpop.f32.mrf.mxu0
  %v1665 = vpop.f32.mrf.mxu0
  %v1666 = vadd.f32 %v1546, %v1665
  %v1667 = vpop.f32.mrf.mxu0
  %1668 = vmatprep.mubr.bf16.mxu0 0
  %1669 = vmatmul.mubr.bf16.gmra.mxu0 %v1511
  %v1670 = vpop.f32.mrf.mxu0
  %v1671 = vadd.f32 %v1546, %v1670
  %v1672 = vpop.f32.mrf.mxu0
  %v1673 = vpop.f32.mrf.mxu0
  %v1674 = vadd.f32 %v1546, %v1673
  %v1675 = vpop.f32.mrf.mxu0
  %1676 = vmatprep.mubr.bf16.mxu0 0
  %1677 = vmatmul.mubr.bf16.gmra.mxu0 %v1512
  %v1678 = vpop.f32.mrf.mxu0
  %v1679 = vadd.f32 %v1546, %v1678
  %v1680 = vpop.f32.mrf.mxu0
  %v1681 = vpop.f32.mrf.mxu0
  %v1682 = vadd.f32 %v1546, %v1681
  %v1683 = vpop.f32.mrf.mxu0
  %1684 = vmatprep.mubr.bf16.mxu0 0
  %1685 = vmatmul.mubr.bf16.gmra.mxu0 %v1513
  %v1686 = vpop.f32.mrf.mxu0
  %v1687 = vadd.f32 %v1546, %v1686
  %v1688 = vpop.f32.mrf.mxu0
  %v1689 = vpop.f32.mrf.mxu0
  %v1690 = vadd.f32 %v1546, %v1689
  %v1691 = vpop.f32.mrf.mxu0
  %1692 = vmatprep.mubr.bf16.mxu0 0
  %1693 = vmatmul.mubr.bf16.gmra.mxu0 %v1514
  %v1694 = vpop.f32.mrf.mxu0
  %v1695 = vadd.f32 %v1546, %v1694
  %v1696 = vpop.f32.mrf.mxu0
  %v1697 = vpop.f32.mrf.mxu0
  %v1698 = vadd.f32 %v1546, %v1697
  %v1699 = vpop.f32.mrf.mxu0
  %1700 = vmatprep.mubr.bf16.mxu0 0
  %1701 = vmatmul.mubr.bf16.gmra.mxu0 %v1515
  %v1702 = vpop.f32.mrf.mxu0
  %v1703 = vadd.f32 %v1546, %v1702
  %v1704 = vpop.f32.mrf.mxu0
  %v1705 = vpop.f32.mrf.mxu0
  %v1706 = vadd.f32 %v1546, %v1705
  %v1707 = vpop.f32.mrf.mxu0
  %1708 = vmatprep.mubr.bf16.mxu0 0
  %1709 = vmatmul.mubr.bf16.gmra.mxu0 %v1516
  %v1710 = vpop.f32.mrf.mxu0
  %v1711 = vadd.f32 %v1546, %v1710
  %v1712 = vpop.f32.mrf.mxu0
  %v1713 = vpop.f32.mrf.mxu0
  %v1714 = vadd.f32 %v1546, %v1713
  %v1715 = vpop.f32.mrf.mxu0
  %1716 = vmatprep.mubr.bf16.mxu0 0
  %1717 = vmatmul.mubr.bf16.gmra.mxu0 %v1517
  %v1718 = vpop.f32.mrf.mxu0
  %v1719 = vadd.f32 %v1546, %v1718
  %v1720 = vpop.f32.mrf.mxu0
  %v1721 = vpop.f32.mrf.mxu0
  %v1722 = vadd.f32 %v1546, %v1721
  %v1723 = vpop.f32.mrf.mxu0
  %1724 = vmatprep.mubr.bf16.mxu0 0
  %1725 = vmatmul.mubr.bf16.gmra.mxu0 %v1518
  %v1726 = vpop.f32.mrf.mxu0
  %v1727 = vadd.f32 %v1546, %v1726
  %v1728 = vpop.f32.mrf.mxu0
  %v1729 = vpop.f32.mrf.mxu0
  %v1730 = vadd.f32 %v1546, %v1729
  %v1731 = vpop.f32.mrf.mxu0
  %1732 = vmatprep.mubr.bf16.mxu0 0
  %1733 = vmatmul.mubr.bf16.gmra.mxu0 %v1519
  %v1734 = vpop.f32.mrf.mxu0
  %v1735 = vadd.f32 %v1546, %v1734
  %v1736 = vpop.f32.mrf.mxu0
  %v1737 = vpop.f32.mrf.mxu0
  %v1738 = vadd.f32 %v1546, %v1737
  %v1739 = vpop.f32.mrf.mxu0
  %1740 = vmatprep.mubr.bf16.mxu0 0
  %1741 = vmatmul.mubr.bf16.gmra.mxu0 %v1520
  %v1742 = vpop.f32.mrf.mxu0
  %v1743 = vadd.f32 %v1546, %v1742
  %v1744 = vpop.f32.mrf.mxu0
  %v1745 = vpop.f32.mrf.mxu0
  %v1746 = vadd.f32 %v1546, %v1745
  %v1747 = vpop.f32.mrf.mxu0
  %1748 = vmatprep.mubr.bf16.mxu0 0
  %1749 = vmatmul.mubr.bf16.gmra.mxu0 %v1521
  %v1750 = vpop.f32.mrf.mxu0
  %v1751 = vadd.f32 %v1546, %v1750
  %v1752 = vpop.f32.mrf.mxu0
  %v1753 = vpop.f32.mrf.mxu0
  %v1754 = vadd.f32 %v1546, %v1753
  %v1755 = vpop.f32.mrf.mxu0
  %1756 = vmatprep.mubr.bf16.mxu0 0
  %1757 = vmatmul.mubr.bf16.gmra.mxu0 %v1522
  %v1758 = vpop.f32.mrf.mxu0
  %v1759 = vadd.f32 %v1546, %v1758
  %v1760 = vpop.f32.mrf.mxu0
  %v1761 = vpop.f32.mrf.mxu0
  %v1762 = vadd.f32 %v1546, %v1761
  %v1763 = vpop.f32.mrf.mxu0
  %1764 = vmatprep.mubr.bf16.mxu0 0
  %1765 = vmatmul.mubr.bf16.gmra.mxu0 %v1523
  %v1766 = vpop.f32.mrf.mxu0
  %v1767 = vadd.f32 %v1546, %v1766
  %v1768 = vpop.f32.mrf.mxu0
  %v1769 = vpop.f32.mrf.mxu0
  %v1770 = vadd.f32 %v1546, %v1769
  %v1771 = vpop.f32.mrf.mxu0
  %1772 = vmatprep.mubr.bf16.mxu0 0
  %1773 = vmatmul.mubr.bf16.gmra.mxu0 %v1524
  %v1774 = vpop.f32.mrf.mxu0
  %v1775 = vadd.f32 %v1546, %v1774
  %v1776 = vpop.f32.mrf.mxu0
  %v1777 = vpop.f32.mrf.mxu0
  %v1778 = vadd.f32 %v1546, %v1777
  %v1779 = vpop.f32.mrf.mxu0
  %1780 = vdwg.mxu0
  %v1781 = vtanh.pop %v1631
  %v1782 = vtanh.pop %v1634
  %v1783 = vtanh.pop %v1639
  %v1784 = vtanh.pop %v1642
  %v1785 = vtanh.pop %v1647
  %v1786 = vtanh.pop %v1650
  %v1787 = vtanh.pop %v1655
  %v1788 = vtanh.pop %v1658
  %v1789 = vtanh.pop %v1663
  %v1790 = vtanh.pop %v1666
  %v1791 = vtanh.pop %v1671
  %v1792 = vtanh.pop %v1674
  %v1793 = vtanh.pop %v1679
  %v1794 = vtanh.pop %v1682
  %v1795 = vtanh.pop %v1687
  %v1796 = vtanh.pop %v1690
  %v1797 = vtanh.pop %v1695
  %v1798 = vtanh.pop %v1698
  %v1799 = vtanh.pop %v1703
  %v1800 = vtanh.pop %v1706
  %v1801 = vtanh.pop %v1711
  %v1802 = vtanh.pop %v1714
  %v1803 = vtanh.pop %v1719
  %v1804 = vtanh.pop %v1722
  %v1805 = vtanh.pop %v1727
  %v1806 = vtanh.pop %v1730
  %v1807 = vtanh.pop %v1735
  %v1808 = vtanh.pop %v1738
  %v1809 = vtanh.pop %v1743
  %v1810 = vtanh.pop %v1746
  %v1811 = vtanh.pop %v1751
  %v1812 = vtanh.pop %v1754
  %v1813 = vtanh.pop %v1759
  %v1814 = vtanh.pop %v1762
  %v1815 = vtanh.pop %v1767
  %v1816 = vtanh.pop %v1770
  %v1817 = vtanh.pop %v1775
  %v1818 = vtanh.pop %v1778
  %1819 = vst [vmem:[%s9] sm:$0xff] %v1781
  %1820 = vst [vmem:[%s9 + $0x8] sm:$0xff] %v1782
  %1821 = vst [vmem:[%s9 + $0x10] sm:$0xff] %v1783
  %1822 = vst [vmem:[%s9 + $0x18] sm:$0xff] %v1784
  %1823 = vst [vmem:[%s9 + $0x20] sm:$0xff] %v1785
  %1824 = vst [vmem:[%s9 + $0x28] sm:$0xff] %v1786
  %1825 = vst [vmem:[%s9 + $0x30] sm:$0xff] %v1787
  %1826 = vst [vmem:[%s9 + $0x38] sm:$0xff] %v1788
  %1827 = vst [vmem:[%s9 + $0x40] sm:$0xff] %v1789
  %1828 = vst [vmem:[%s9 + $0x48] sm:$0xff] %v1790
  %1829 = vst [vmem:[%s9 + $0x50] sm:$0xff] %v1791
  %1830 = vst [vmem:[%s9 + $0x58] sm:$0xff] %v1792
  %1831 = vst [vmem:[%s9 + $0x60] sm:$0xff] %v1793
  %1832 = vst [vmem:[%s9 + $0x68] sm:$0xff] %v1794
  %1833 = vst [vmem:[%s9 + $0x70] sm:$0xff] %v1795
  %1834 = vst [vmem:[%s9 + $0x78] sm:$0xff] %v1796
  %1835 = vst [vmem:[%s9 + $0x80] sm:$0xff] %v1797
  %1836 = vst [vmem:[%s9 + $0x88] sm:$0xff] %v1798
  %1837 = vst [vmem:[%s9 + $0x90] sm:$0xff] %v1799
  %1838 = vst [vmem:[%s9 + $0x98] sm:$0xff] %v1800
  %1839 = vst [vmem:[%s9 + $0xa0] sm:$0xff] %v1801
  %1840 = vst [vmem:[%s9 + $0xa8] sm:$0xff] %v1802
  %1841 = vst [vmem:[%s9 + $0xb0] sm:$0xff] %v1803
  %1842 = vst [vmem:[%s9 + $0xb8] sm:$0xff] %v1804
  %1843 = vst [vmem:[%s9 + $0xc0] sm:$0xff] %v1805
  %1844 = vst [vmem:[%s9 + $0xc8] sm:$0xff] %v1806
  %1845 = vst [vmem:[%s9 + $0xd0] sm:$0xff] %v1807
  %1846 = vst [vmem:[%s9 + $0xd8] sm:$0xff] %v1808
  %1847 = vst [vmem:[%s9 + $0xe0] sm:$0xff] %v1809
  %1848 = vst [vmem:[%s9 + $0xe8] sm:$0xff] %v1810
  %1849 = vst [vmem:[%s9 + $0xf0] sm:$0xff] %v1811
  %1850 = vst [vmem:[%s9 + $0xf8] sm:$0xff] %v1812
  %1851 = vst [vmem:[%s9 + $0x100] sm:$0xff] %v1813
  %1852 = vst [vmem:[%s9 + $0x108] sm:$0xff] %v1814
  %1853 = vst [vmem:[%s9 + $0x110] sm:$0xff] %v1815
  %1854 = vst [vmem:[%s9 + $0x118] sm:$0xff] %v1816
  %1855 = vst [vmem:[%s9 + $0x120] sm:$0xff] %v1817
  %1856 = vst [vmem:[%s9 + $0x128] sm:$0xff] %v1818
  // Predicated region
  $region42: #{actor_forward.1} parent=0 // pred_check
    _
  $region43: #{actor_forward.1} parent=0 // pred_check_branch
    %1858 = sbr.rel (0) target = $region45
  $region44: #{actor_forward.1} parent=0 // pred_region
    _
  $region45: #{actor_forward.1} parent=0 // pred_fallthru
    _
  // Predicated region
  $region46: #{actor_forward.1} parent=0 // pred_check
    _
  $region47: #{actor_forward.1} parent=0 // pred_check_branch
    %1860 = sbr.rel (0) target = $region49
  $region48: #{actor_forward.1} parent=0 // pred_region
    _
  $region49: #{actor_forward.1} parent=0 // pred_fallthru
    _

</llo_original>
